<compile_context>
chip_gen: v7x
topology: tpu7x:2x2x1
jax: 0.10.0
libtpu: 0.0.40
codegen_flags: <defaults>
</compile_context>

<pallas_src>
import jax
import jax.numpy as jnp
from jax.experimental import pallas as pl
from jax.experimental.pallas import tpu as pltpu


def _scaled_pointwise_conv_kernel(x_ref, s_ref, w_ref, o_ref):
    # x_ref: (1, C, HW)   f32   activations (pure reshape of NCHW)
    # s_ref: (1, 1, C)    f32   per-input-channel scale
    # w_ref: (TCO, C)     bf16  1x1 conv weight, native (Cout, Cin) layout
    # o_ref: (1, TCO, HW) f32   output block (already in NCHW order)
    ws = w_ref[...].astype(jnp.float32) * s_ref[0]          # (TCO, C) * (1, C), lane bcast
    o_ref[0] = jnp.dot(
        ws, x_ref[0], preferred_element_type=jnp.float32
    ).astype(o_ref.dtype)


def scaled_pointwise_conv(x_nchw, scale_nc11, w_oihw):
    """Equivalent of  Conv2d(Cin, Cout, k=1, bias=False)(scale * x)  in NCHW."""
    N, C, H, W = x_nchw.shape
    Cout = w_oihw.shape[0]
    HW = H * W

    # Pure reshapes only — no transposes in the wrapper.
    x3d = x_nchw.reshape(N, C, HW)                 # (N, C, HW)
    s3d = scale_nc11.reshape(N, 1, C)              # (N, 1, C)
    w2d = w_oihw[:, :, 0, 0].astype(jnp.bfloat16)  # (Cout, Cin), bf16 to halve weight DMA

    # Shard Cout across the two TensorCores on v7x; single block elsewhere.
    try:
        kind = jax.devices()[0].device_kind.lower()
    except Exception:
        kind = ""
    is_v7x = ("v7" in kind) or ("7x" in kind)
    cout_blocks = 2 if (is_v7x and Cout % 256 == 0) else 1
    tco = Cout // cout_blocks

    flops = 2 * N * Cout * C * HW
    bytes_accessed = (x3d.size * 4) + (s3d.size * 4) + (w2d.size * 2) + (N * Cout * HW * 4)

    out3d = pl.pallas_call(
        _scaled_pointwise_conv_kernel,
        out_shape=jax.ShapeDtypeStruct((N, Cout, HW), x_nchw.dtype),
        grid=(N, cout_blocks),
        in_specs=[
            pl.BlockSpec((1, C, HW), lambda n, j: (n, 0, 0)),   # activations
            pl.BlockSpec((1, 1, C), lambda n, j: (n, 0, 0)),    # per-channel scale
            pl.BlockSpec((tco, C), lambda n, j: (j, 0)),        # weight (half per Cout block)
        ],
        out_specs=pl.BlockSpec((1, tco, HW), lambda n, j: (n, j, 0)),
        compiler_params=pltpu.CompilerParams(
            dimension_semantics=("parallel", "parallel"),
        ),
        cost_estimate=pl.CostEstimate(
            flops=flops, transcendentals=0, bytes_accessed=bytes_accessed
        ),
    )(x3d, s3d, w2d)

    # (N, Cout, HW) -> (N, Cout, H, W) : free reshape, already NCHW-ordered.
    return out3d.reshape(N, Cout, H, W)


if __name__ == "__main__":
    key = jax.random.PRNGKey(0)
    k1, k2, k3 = jax.random.split(key, 3)

    # Shapes match the PyTorch module's forward exactly.
    N, Cin, H, W = 1, 1536, 7, 7
    Cout = 256

    x417 = jax.random.normal(k1, (N, Cin, H, W), dtype=jnp.float32)   # activations
    x422 = jax.random.normal(k2, (N, Cin, 1, 1), dtype=jnp.float32)   # per-channel gate
    # Conv2d(1536, 256, kernel_size=1, bias=False) weight: (Cout, Cin, 1, 1)
    w = (jax.random.normal(k3, (Cout, Cin, 1, 1), dtype=jnp.float32)
         * (1.0 / jnp.sqrt(Cin)))

    out = jax.block_until_ready(scaled_pointwise_conv(x417, x422, w))

    # Reference check in plain JAX (f32-accurate; weight inside the kernel is bf16).
    ref = jnp.einsum(
        "nchw,oc->nohw", x417 * x422, w[:, :, 0, 0],
        precision=jax.lax.Precision.HIGHEST,
    )
    assert out.shape == (N, Cout, H, W), out.shape
    assert jnp.allclose(out, ref, atol=1e-2, rtol=1e-2), "mismatch vs reference"

    print("KERNEL_OK")
</pallas_src>

<mosaic_0001>
module attributes {stable_mosaic.version = 11 : i64} {
  func.func @_scaled_pointwise_conv_kernel(%arg0: i32, %arg1: i32, %arg2: memref<1x1536x49xf32, #tpu.memory_space<vmem>>, %arg3: memref<1x1x1536xf32, #tpu.memory_space<vmem>>, %arg4: memref<256x1536xbf16, #tpu.memory_space<vmem>>, %arg5: memref<1x256x49xf32, #tpu.memory_space<vmem>>) attributes {dimension_semantics = [#tpu.dimension_semantics<parallel>, #tpu.dimension_semantics<parallel>], iteration_bounds = array<i64: 1, 1>, scalar_prefetch = 0 : i64, scratch_operands = 0 : i64, tpu.core_type = #tpu.core_type<tc>, window_params = [{transform_indices = @transform_0, window_bounds = array<i64: 1, 1536, 49>}, {transform_indices = @transform_1, window_bounds = array<i64: 1, 1, 1536>}, {transform_indices = @transform_2, window_bounds = array<i64: 256, 1536>}, {transform_indices = @transform_3, window_bounds = array<i64: 1, 256, 49>}]} {
    %c0 = arith.constant 0 : index
    %c0_0 = arith.constant 0 : index
    %0 = vector.load %arg4[%c0, %c0_0] : memref<256x1536xbf16, #tpu.memory_space<vmem>>, vector<256x1536xbf16>
    %1 = arith.extf %0 : vector<256x1536xbf16> to vector<256x1536xf32>
    %c0_1 = arith.constant 0 : index
    %c0_2 = arith.constant 0 : index
    %c0_3 = arith.constant 0 : index
    %2 = vector.load %arg3[%c0_1, %c0_2, %c0_3] : memref<1x1x1536xf32, #tpu.memory_space<vmem>>, vector<1x1x1536xf32>
    %3 = vector.shape_cast %2 : vector<1x1x1536xf32> to vector<1x1536xf32>
    %4 = vector.broadcast %3 : vector<1x1536xf32> to vector<256x1536xf32>
    %5 = arith.mulf %1, %4 : vector<256x1536xf32>
    %c0_4 = arith.constant 0 : index
    %c0_5 = arith.constant 0 : index
    %c0_6 = arith.constant 0 : index
    %6 = vector.load %arg2[%c0_4, %c0_5, %c0_6] : memref<1x1536x49xf32, #tpu.memory_space<vmem>>, vector<1x1536x49xf32>
    %7 = vector.shape_cast %6 : vector<1x1536x49xf32> to vector<1536x49xf32>
    %cst = arith.constant dense<0.000000e+00> : vector<256x49xf32>
    %8 = tpu.matmul %5, %7, %cst {dimension_numbers = #tpu.dot_dimension_numbers<[1], [0], [0], [1], [0, 0, 1, 1], [], []>} : vector<256x1536xf32>, vector<1536x49xf32>, vector<256x49xf32> -> vector<256x49xf32>
    %c0_7 = arith.constant 0 : index
    %c0_8 = arith.constant 0 : index
    %c0_9 = arith.constant 0 : index
    %9 = vector.load %arg5[%c0_7, %c0_8, %c0_9] : memref<1x256x49xf32, #tpu.memory_space<vmem>>, vector<1x256x49xf32>
    %10 = vector.shape_cast %9 : vector<1x256x49xf32> to vector<256x49xf32>
    %11 = vector.shape_cast %8 : vector<256x49xf32> to vector<1x256x49xf32>
    tpu.vector_store %arg5[%c0_7, %c0_8, %c0_9], %11 {strides = array<i32>} : memref<1x256x49xf32, #tpu.memory_space<vmem>>, vector<1x256x49xf32>,
    return
  }
  func.func @transform_0(%arg0: i32, %arg1: i32) -> (i32, i32, i32) {
    %c0_i32 = arith.constant 0 : i32
    %c0_i32_0 = arith.constant 0 : i32
    %c0_i32_1 = arith.constant 0 : i32
    return %arg0, %c0_i32, %c0_i32_0 : i32, i32, i32
  }
  func.func @transform_1(%arg0: i32, %arg1: i32) -> (i32, i32, i32) {
    %c0_i32 = arith.constant 0 : i32
    %c0_i32_0 = arith.constant 0 : i32
    %c0_i32_1 = arith.constant 0 : i32
    return %arg0, %c0_i32, %c0_i32_0 : i32, i32, i32
  }
  func.func @transform_2(%arg0: i32, %arg1: i32) -> (i32, i32) {
    %c0_i32 = arith.constant 0 : i32
    %c0_i32_0 = arith.constant 0 : i32
    return %arg1, %c0_i32 : i32, i32
  }
  func.func @transform_3(%arg0: i32, %arg1: i32) -> (i32, i32, i32) {
    %c0_i32 = arith.constant 0 : i32
    %c0_i32_0 = arith.constant 0 : i32
    return %arg0, %arg1, %c0_i32 : i32, i32, i32
  }
}

</mosaic_0001>

<llo_original>
// kernel: tpu_custom_call.1
$region0: #{tpu_custom_call.1}
  #allocation0 [shape = 'u32[]', space=smem, size = 0x4, offset = 0x4, fixed_abs, tag = 'smem constant byte address 0x4 - core index']
  #allocation1 [shape = 'u32[144,128]{1,0:T(1,128)}', space=vmem, size = 0x12000, scoped, tag = 'internal scratch']
  %s0 = inlined_call_operand.vmem [shape: f32[1,1536,49], index: 0, kind: input, shape index: {}]
  %s1 = inlined_call_operand.vmem [shape: f32[1,1,1536], index: 1, kind: input, shape index: {}]
  %s2 = inlined_call_operand.vmem [shape: bf16[256,1536], index: 2, kind: input, shape index: {}]
  %s3 = inlined_call_operand.vmem [shape: f32[1,256,49], index: 3, kind: output, shape index: {}]
  %s4 = sld [smem:[#allocation0]]
  $region22: #{tpu_custom_call.1} parent=0
    _
  %s6 = ssub.s32 1, %s4
  %s7 = scalar_select 0, %s6, %s4
  // Predicated region
  $region2: #{tpu_custom_call.1} parent=0 // pred_check
    _
  $region3: #{tpu_custom_call.1} parent=0 // pred_check_branch
    %9 = sbr.rel (0) target = $region5
  $region4: #{tpu_custom_call.1} parent=0 // pred_region
    _
  $region5: #{tpu_custom_call.1} parent=0 // pred_fallthru
    _
  // Predicated region
  $region6: #{tpu_custom_call.1} parent=0 // pred_check
    _
  $region7: #{tpu_custom_call.1} parent=0 // pred_check_branch
    %11 = sbr.rel (0) target = $region9
  $region8: #{tpu_custom_call.1} parent=0 // pred_region
    _
  $region9: #{tpu_custom_call.1} parent=0 // pred_fallthru
    _
  // Predicated region
  $region10: #{tpu_custom_call.1} parent=0 // pred_check
    _
  $region11: #{tpu_custom_call.1} parent=0 // pred_check_branch
    %13 = sbr.rel (0) target = $region13
  $region12: #{tpu_custom_call.1} parent=0 // pred_region
    _
  $region13: #{tpu_custom_call.1} parent=0 // pred_fallthru
    _
  %v14 = vld [vmem:[%s2] sm:$0xff]
  %v15 = vld [vmem:[%s2 + $0x8] sm:$0xff]
  %v16 = vld [vmem:[%s2 + $0x10] sm:$0xff]
  %v17 = vld [vmem:[%s2 + $0x18] sm:$0xff]
  %v18 = vld [vmem:[%s2 + $0x20] sm:$0xff]
  %v19 = vld [vmem:[%s2 + $0x28] sm:$0xff]
  %v20 = vld [vmem:[%s2 + $0x30] sm:$0xff]
  %v21 = vld [vmem:[%s2 + $0x38] sm:$0xff]
  %v22 = vld [vmem:[%s2 + $0x40] sm:$0xff]
  %v23 = vld [vmem:[%s2 + $0x48] sm:$0xff]
  %v24 = vld [vmem:[%s2 + $0x50] sm:$0xff]
  %v25 = vld [vmem:[%s2 + $0x58] sm:$0xff]
  %v26 = vld [vmem:[%s2 + $0x60] sm:$0xff]
  %v27 = vld [vmem:[%s2 + $0x68] sm:$0xff]
  %v28 = vld [vmem:[%s2 + $0x70] sm:$0xff]
  %v29 = vld [vmem:[%s2 + $0x78] sm:$0xff]
  %v30 = vld [vmem:[%s2 + $0x80] sm:$0xff]
  %v31 = vld [vmem:[%s2 + $0x88] sm:$0xff]
  %v32 = vld [vmem:[%s2 + $0x90] sm:$0xff]
  %v33 = vld [vmem:[%s2 + $0x98] sm:$0xff]
  %v34 = vld [vmem:[%s2 + $0xa0] sm:$0xff]
  %v35 = vld [vmem:[%s2 + $0xa8] sm:$0xff]
  %v36 = vld [vmem:[%s2 + $0xb0] sm:$0xff]
  %v37 = vld [vmem:[%s2 + $0xb8] sm:$0xff]
  %v38 = vld [vmem:[%s2 + $0xc0] sm:$0xff]
  %v39 = vld [vmem:[%s2 + $0xc8] sm:$0xff]
  %v40 = vld [vmem:[%s2 + $0xd0] sm:$0xff]
  %v41 = vld [vmem:[%s2 + $0xd8] sm:$0xff]
  %v42 = vld [vmem:[%s2 + $0xe0] sm:$0xff]
  %v43 = vld [vmem:[%s2 + $0xe8] sm:$0xff]
  %v44 = vld [vmem:[%s2 + $0xf0] sm:$0xff]
  %v45 = vld [vmem:[%s2 + $0xf8] sm:$0xff]
  %v46 = vld [vmem:[%s2 + $0x100] sm:$0xff]
  %v47 = vld [vmem:[%s2 + $0x108] sm:$0xff]
  %v48 = vld [vmem:[%s2 + $0x110] sm:$0xff]
  %v49 = vld [vmem:[%s2 + $0x118] sm:$0xff]
  %v50 = vld [vmem:[%s2 + $0x120] sm:$0xff]
  %v51 = vld [vmem:[%s2 + $0x128] sm:$0xff]
  %v52 = vld [vmem:[%s2 + $0x130] sm:$0xff]
  %v53 = vld [vmem:[%s2 + $0x138] sm:$0xff]
  %v54 = vld [vmem:[%s2 + $0x140] sm:$0xff]
  %v55 = vld [vmem:[%s2 + $0x148] sm:$0xff]
  %v56 = vld [vmem:[%s2 + $0x150] sm:$0xff]
  %v57 = vld [vmem:[%s2 + $0x158] sm:$0xff]
  %v58 = vld [vmem:[%s2 + $0x160] sm:$0xff]
  %v59 = vld [vmem:[%s2 + $0x168] sm:$0xff]
  %v60 = vld [vmem:[%s2 + $0x170] sm:$0xff]
  %v61 = vld [vmem:[%s2 + $0x178] sm:$0xff]
  %v62 = vld [vmem:[%s2 + $0x180] sm:$0xff]
  %v63 = vld [vmem:[%s2 + $0x188] sm:$0xff]
  %v64 = vld [vmem:[%s2 + $0x190] sm:$0xff]
  %v65 = vld [vmem:[%s2 + $0x198] sm:$0xff]
  %v66 = vld [vmem:[%s2 + $0x1a0] sm:$0xff]
  %v67 = vld [vmem:[%s2 + $0x1a8] sm:$0xff]
  %v68 = vld [vmem:[%s2 + $0x1b0] sm:$0xff]
  %v69 = vld [vmem:[%s2 + $0x1b8] sm:$0xff]
  %v70 = vld [vmem:[%s2 + $0x1c0] sm:$0xff]
  %v71 = vld [vmem:[%s2 + $0x1c8] sm:$0xff]
  %v72 = vld [vmem:[%s2 + $0x1d0] sm:$0xff]
  %v73 = vld [vmem:[%s2 + $0x1d8] sm:$0xff]
  %v74 = vld [vmem:[%s2 + $0x1e0] sm:$0xff]
  %v75 = vld [vmem:[%s2 + $0x1e8] sm:$0xff]
  %v76 = vld [vmem:[%s2 + $0x1f0] sm:$0xff]
  %v77 = vld [vmem:[%s2 + $0x1f8] sm:$0xff]
  %v78 = vld [vmem:[%s2 + $0x200] sm:$0xff]
  %v79 = vld [vmem:[%s2 + $0x208] sm:$0xff]
  %v80 = vld [vmem:[%s2 + $0x210] sm:$0xff]
  %v81 = vld [vmem:[%s2 + $0x218] sm:$0xff]
  %v82 = vld [vmem:[%s2 + $0x220] sm:$0xff]
  %v83 = vld [vmem:[%s2 + $0x228] sm:$0xff]
  %v84 = vld [vmem:[%s2 + $0x230] sm:$0xff]
  %v85 = vld [vmem:[%s2 + $0x238] sm:$0xff]
  %v86 = vld [vmem:[%s2 + $0x240] sm:$0xff]
  %v87 = vld [vmem:[%s2 + $0x248] sm:$0xff]
  %v88 = vld [vmem:[%s2 + $0x250] sm:$0xff]
  %v89 = vld [vmem:[%s2 + $0x258] sm:$0xff]
  %v90 = vld [vmem:[%s2 + $0x260] sm:$0xff]
  %v91 = vld [vmem:[%s2 + $0x268] sm:$0xff]
  %v92 = vld [vmem:[%s2 + $0x270] sm:$0xff]
  %v93 = vld [vmem:[%s2 + $0x278] sm:$0xff]
  %v94 = vld [vmem:[%s2 + $0x280] sm:$0xff]
  %v95 = vld [vmem:[%s2 + $0x288] sm:$0xff]
  %v96 = vld [vmem:[%s2 + $0x290] sm:$0xff]
  %v97 = vld [vmem:[%s2 + $0x298] sm:$0xff]
  %v98 = vld [vmem:[%s2 + $0x2a0] sm:$0xff]
  %v99 = vld [vmem:[%s2 + $0x2a8] sm:$0xff]
  %v100 = vld [vmem:[%s2 + $0x2b0] sm:$0xff]
  %v101 = vld [vmem:[%s2 + $0x2b8] sm:$0xff]
  %v102 = vld [vmem:[%s2 + $0x2c0] sm:$0xff]
  %v103 = vld [vmem:[%s2 + $0x2c8] sm:$0xff]
  %v104 = vld [vmem:[%s2 + $0x2d0] sm:$0xff]
  %v105 = vld [vmem:[%s2 + $0x2d8] sm:$0xff]
  %v106 = vld [vmem:[%s2 + $0x2e0] sm:$0xff]
  %v107 = vld [vmem:[%s2 + $0x2e8] sm:$0xff]
  %v108 = vld [vmem:[%s2 + $0x2f0] sm:$0xff]
  %v109 = vld [vmem:[%s2 + $0x2f8] sm:$0xff]
  %v110 = vld [vmem:[%s2 + $0x300] sm:$0xff]
  %v111 = vld [vmem:[%s2 + $0x308] sm:$0xff]
  %v112 = vld [vmem:[%s2 + $0x310] sm:$0xff]
  %v113 = vld [vmem:[%s2 + $0x318] sm:$0xff]
  %v114 = vld [vmem:[%s2 + $0x320] sm:$0xff]
  %v115 = vld [vmem:[%s2 + $0x328] sm:$0xff]
  %v116 = vld [vmem:[%s2 + $0x330] sm:$0xff]
  %v117 = vld [vmem:[%s2 + $0x338] sm:$0xff]
  %v118 = vld [vmem:[%s2 + $0x340] sm:$0xff]
  %v119 = vld [vmem:[%s2 + $0x348] sm:$0xff]
  %v120 = vld [vmem:[%s2 + $0x350] sm:$0xff]
  %v121 = vld [vmem:[%s2 + $0x358] sm:$0xff]
  %v122 = vld [vmem:[%s2 + $0x360] sm:$0xff]
  %v123 = vld [vmem:[%s2 + $0x368] sm:$0xff]
  %v124 = vld [vmem:[%s2 + $0x370] sm:$0xff]
  %v125 = vld [vmem:[%s2 + $0x378] sm:$0xff]
  %v126 = vld [vmem:[%s2 + $0x380] sm:$0xff]
  %v127 = vld [vmem:[%s2 + $0x388] sm:$0xff]
  %v128 = vld [vmem:[%s2 + $0x390] sm:$0xff]
  %v129 = vld [vmem:[%s2 + $0x398] sm:$0xff]
  %v130 = vld [vmem:[%s2 + $0x3a0] sm:$0xff]
  %v131 = vld [vmem:[%s2 + $0x3a8] sm:$0xff]
  %v132 = vld [vmem:[%s2 + $0x3b0] sm:$0xff]
  %v133 = vld [vmem:[%s2 + $0x3b8] sm:$0xff]
  %v134 = vld [vmem:[%s2 + $0x3c0] sm:$0xff]
  %v135 = vld [vmem:[%s2 + $0x3c8] sm:$0xff]
  %v136 = vld [vmem:[%s2 + $0x3d0] sm:$0xff]
  %v137 = vld [vmem:[%s2 + $0x3d8] sm:$0xff]
  %v138 = vld [vmem:[%s2 + $0x3e0] sm:$0xff]
  %v139 = vld [vmem:[%s2 + $0x3e8] sm:$0xff]
  %v140 = vld [vmem:[%s2 + $0x3f0] sm:$0xff]
  %v141 = vld [vmem:[%s2 + $0x3f8] sm:$0xff]
  %v142 = vld [vmem:[%s2 + $0x400] sm:$0xff]
  %v143 = vld [vmem:[%s2 + $0x408] sm:$0xff]
  %v144 = vld [vmem:[%s2 + $0x410] sm:$0xff]
  %v145 = vld [vmem:[%s2 + $0x418] sm:$0xff]
  %v146 = vld [vmem:[%s2 + $0x420] sm:$0xff]
  %v147 = vld [vmem:[%s2 + $0x428] sm:$0xff]
  %v148 = vld [vmem:[%s2 + $0x430] sm:$0xff]
  %v149 = vld [vmem:[%s2 + $0x438] sm:$0xff]
  %v150 = vld [vmem:[%s2 + $0x440] sm:$0xff]
  %v151 = vld [vmem:[%s2 + $0x448] sm:$0xff]
  %v152 = vld [vmem:[%s2 + $0x450] sm:$0xff]
  %v153 = vld [vmem:[%s2 + $0x458] sm:$0xff]
  %v154 = vld [vmem:[%s2 + $0x460] sm:$0xff]
  %v155 = vld [vmem:[%s2 + $0x468] sm:$0xff]
  %v156 = vld [vmem:[%s2 + $0x470] sm:$0xff]
  %v157 = vld [vmem:[%s2 + $0x478] sm:$0xff]
  %v158 = vld [vmem:[%s2 + $0x480] sm:$0xff]
  %v159 = vld [vmem:[%s2 + $0x488] sm:$0xff]
  %v160 = vld [vmem:[%s2 + $0x490] sm:$0xff]
  %v161 = vld [vmem:[%s2 + $0x498] sm:$0xff]
  %v162 = vld [vmem:[%s2 + $0x4a0] sm:$0xff]
  %v163 = vld [vmem:[%s2 + $0x4a8] sm:$0xff]
  %v164 = vld [vmem:[%s2 + $0x4b0] sm:$0xff]
  %v165 = vld [vmem:[%s2 + $0x4b8] sm:$0xff]
  %v166 = vld [vmem:[%s2 + $0x4c0] sm:$0xff]
  %v167 = vld [vmem:[%s2 + $0x4c8] sm:$0xff]
  %v168 = vld [vmem:[%s2 + $0x4d0] sm:$0xff]
  %v169 = vld [vmem:[%s2 + $0x4d8] sm:$0xff]
  %v170 = vld [vmem:[%s2 + $0x4e0] sm:$0xff]
  %v171 = vld [vmem:[%s2 + $0x4e8] sm:$0xff]
  %v172 = vld [vmem:[%s2 + $0x4f0] sm:$0xff]
  %v173 = vld [vmem:[%s2 + $0x4f8] sm:$0xff]
  %v174 = vld [vmem:[%s2 + $0x500] sm:$0xff]
  %v175 = vld [vmem:[%s2 + $0x508] sm:$0xff]
  %v176 = vld [vmem:[%s2 + $0x510] sm:$0xff]
  %v177 = vld [vmem:[%s2 + $0x518] sm:$0xff]
  %v178 = vld [vmem:[%s2 + $0x520] sm:$0xff]
  %v179 = vld [vmem:[%s2 + $0x528] sm:$0xff]
  %v180 = vld [vmem:[%s2 + $0x530] sm:$0xff]
  %v181 = vld [vmem:[%s2 + $0x538] sm:$0xff]
  %v182 = vld [vmem:[%s2 + $0x540] sm:$0xff]
  %v183 = vld [vmem:[%s2 + $0x548] sm:$0xff]
  %v184 = vld [vmem:[%s2 + $0x550] sm:$0xff]
  %v185 = vld [vmem:[%s2 + $0x558] sm:$0xff]
  %v186 = vld [vmem:[%s2 + $0x560] sm:$0xff]
  %v187 = vld [vmem:[%s2 + $0x568] sm:$0xff]
  %v188 = vld [vmem:[%s2 + $0x570] sm:$0xff]
  %v189 = vld [vmem:[%s2 + $0x578] sm:$0xff]
  %v190 = vld [vmem:[%s2 + $0x580] sm:$0xff]
  %v191 = vld [vmem:[%s2 + $0x588] sm:$0xff]
  %v192 = vld [vmem:[%s2 + $0x590] sm:$0xff]
  %v193 = vld [vmem:[%s2 + $0x598] sm:$0xff]
  %v194 = vld [vmem:[%s2 + $0x5a0] sm:$0xff]
  %v195 = vld [vmem:[%s2 + $0x5a8] sm:$0xff]
  %v196 = vld [vmem:[%s2 + $0x5b0] sm:$0xff]
  %v197 = vld [vmem:[%s2 + $0x5b8] sm:$0xff]
  %v198 = vld [vmem:[%s2 + $0x5c0] sm:$0xff]
  %v199 = vld [vmem:[%s2 + $0x5c8] sm:$0xff]
  %v200 = vld [vmem:[%s2 + $0x5d0] sm:$0xff]
  %v201 = vld [vmem:[%s2 + $0x5d8] sm:$0xff]
  %v202 = vld [vmem:[%s2 + $0x5e0] sm:$0xff]
  %v203 = vld [vmem:[%s2 + $0x5e8] sm:$0xff]
  %v204 = vld [vmem:[%s2 + $0x5f0] sm:$0xff]
  %v205 = vld [vmem:[%s2 + $0x5f8] sm:$0xff]
  %v206 = vunpack.c.l.bf16 %v14
  %v207 = vunpack.c.h.bf16 %v14
  %v208 = vunpack.c.l.bf16 %v15
  %v209 = vunpack.c.h.bf16 %v15
  %v210 = vunpack.c.l.bf16 %v16
  %v211 = vunpack.c.h.bf16 %v16
  %v212 = vunpack.c.l.bf16 %v17
  %v213 = vunpack.c.h.bf16 %v17
  %v214 = vunpack.c.l.bf16 %v18
  %v215 = vunpack.c.h.bf16 %v18
  %v216 = vunpack.c.l.bf16 %v19
  %v217 = vunpack.c.h.bf16 %v19
  %v218 = vunpack.c.l.bf16 %v20
  %v219 = vunpack.c.h.bf16 %v20
  %v220 = vunpack.c.l.bf16 %v21
  %v221 = vunpack.c.h.bf16 %v21
  %v222 = vunpack.c.l.bf16 %v22
  %v223 = vunpack.c.h.bf16 %v22
  %v224 = vunpack.c.l.bf16 %v23
  %v225 = vunpack.c.h.bf16 %v23
  %v226 = vunpack.c.l.bf16 %v24
  %v227 = vunpack.c.h.bf16 %v24
  %v228 = vunpack.c.l.bf16 %v25
  %v229 = vunpack.c.h.bf16 %v25
  %v230 = vunpack.c.l.bf16 %v26
  %v231 = vunpack.c.h.bf16 %v26
  %v232 = vunpack.c.l.bf16 %v27
  %v233 = vunpack.c.h.bf16 %v27
  %v234 = vunpack.c.l.bf16 %v28
  %v235 = vunpack.c.h.bf16 %v28
  %v236 = vunpack.c.l.bf16 %v29
  %v237 = vunpack.c.h.bf16 %v29
  %v238 = vunpack.c.l.bf16 %v30
  %v239 = vunpack.c.h.bf16 %v30
  %v240 = vunpack.c.l.bf16 %v31
  %v241 = vunpack.c.h.bf16 %v31
  %v242 = vunpack.c.l.bf16 %v32
  %v243 = vunpack.c.h.bf16 %v32
  %v244 = vunpack.c.l.bf16 %v33
  %v245 = vunpack.c.h.bf16 %v33
  %v246 = vunpack.c.l.bf16 %v34
  %v247 = vunpack.c.h.bf16 %v34
  %v248 = vunpack.c.l.bf16 %v35
  %v249 = vunpack.c.h.bf16 %v35
  %v250 = vunpack.c.l.bf16 %v36
  %v251 = vunpack.c.h.bf16 %v36
  %v252 = vunpack.c.l.bf16 %v37
  %v253 = vunpack.c.h.bf16 %v37
  %v254 = vunpack.c.l.bf16 %v38
  %v255 = vunpack.c.h.bf16 %v38
  %v256 = vunpack.c.l.bf16 %v39
  %v257 = vunpack.c.h.bf16 %v39
  %v258 = vunpack.c.l.bf16 %v40
  %v259 = vunpack.c.h.bf16 %v40
  %v260 = vunpack.c.l.bf16 %v41
  %v261 = vunpack.c.h.bf16 %v41
  %v262 = vunpack.c.l.bf16 %v42
  %v263 = vunpack.c.h.bf16 %v42
  %v264 = vunpack.c.l.bf16 %v43
  %v265 = vunpack.c.h.bf16 %v43
  %v266 = vunpack.c.l.bf16 %v44
  %v267 = vunpack.c.h.bf16 %v44
  %v268 = vunpack.c.l.bf16 %v45
  %v269 = vunpack.c.h.bf16 %v45
  %v270 = vunpack.c.l.bf16 %v46
  %v271 = vunpack.c.h.bf16 %v46
  %v272 = vunpack.c.l.bf16 %v47
  %v273 = vunpack.c.h.bf16 %v47
  %v274 = vunpack.c.l.bf16 %v48
  %v275 = vunpack.c.h.bf16 %v48
  %v276 = vunpack.c.l.bf16 %v49
  %v277 = vunpack.c.h.bf16 %v49
  %v278 = vunpack.c.l.bf16 %v50
  %v279 = vunpack.c.h.bf16 %v50
  %v280 = vunpack.c.l.bf16 %v51
  %v281 = vunpack.c.h.bf16 %v51
  %v282 = vunpack.c.l.bf16 %v52
  %v283 = vunpack.c.h.bf16 %v52
  %v284 = vunpack.c.l.bf16 %v53
  %v285 = vunpack.c.h.bf16 %v53
  %v286 = vunpack.c.l.bf16 %v54
  %v287 = vunpack.c.h.bf16 %v54
  %v288 = vunpack.c.l.bf16 %v55
  %v289 = vunpack.c.h.bf16 %v55
  %v290 = vunpack.c.l.bf16 %v56
  %v291 = vunpack.c.h.bf16 %v56
  %v292 = vunpack.c.l.bf16 %v57
  %v293 = vunpack.c.h.bf16 %v57
  %v294 = vunpack.c.l.bf16 %v58
  %v295 = vunpack.c.h.bf16 %v58
  %v296 = vunpack.c.l.bf16 %v59
  %v297 = vunpack.c.h.bf16 %v59
  %v298 = vunpack.c.l.bf16 %v60
  %v299 = vunpack.c.h.bf16 %v60
  %v300 = vunpack.c.l.bf16 %v61
  %v301 = vunpack.c.h.bf16 %v61
  %v302 = vunpack.c.l.bf16 %v62
  %v303 = vunpack.c.h.bf16 %v62
  %v304 = vunpack.c.l.bf16 %v63
  %v305 = vunpack.c.h.bf16 %v63
  %v306 = vunpack.c.l.bf16 %v64
  %v307 = vunpack.c.h.bf16 %v64
  %v308 = vunpack.c.l.bf16 %v65
  %v309 = vunpack.c.h.bf16 %v65
  %v310 = vunpack.c.l.bf16 %v66
  %v311 = vunpack.c.h.bf16 %v66
  %v312 = vunpack.c.l.bf16 %v67
  %v313 = vunpack.c.h.bf16 %v67
  %v314 = vunpack.c.l.bf16 %v68
  %v315 = vunpack.c.h.bf16 %v68
  %v316 = vunpack.c.l.bf16 %v69
  %v317 = vunpack.c.h.bf16 %v69
  %v318 = vunpack.c.l.bf16 %v70
  %v319 = vunpack.c.h.bf16 %v70
  %v320 = vunpack.c.l.bf16 %v71
  %v321 = vunpack.c.h.bf16 %v71
  %v322 = vunpack.c.l.bf16 %v72
  %v323 = vunpack.c.h.bf16 %v72
  %v324 = vunpack.c.l.bf16 %v73
  %v325 = vunpack.c.h.bf16 %v73
  %v326 = vunpack.c.l.bf16 %v74
  %v327 = vunpack.c.h.bf16 %v74
  %v328 = vunpack.c.l.bf16 %v75
  %v329 = vunpack.c.h.bf16 %v75
  %v330 = vunpack.c.l.bf16 %v76
  %v331 = vunpack.c.h.bf16 %v76
  %v332 = vunpack.c.l.bf16 %v77
  %v333 = vunpack.c.h.bf16 %v77
  %v334 = vunpack.c.l.bf16 %v78
  %v335 = vunpack.c.h.bf16 %v78
  %v336 = vunpack.c.l.bf16 %v79
  %v337 = vunpack.c.h.bf16 %v79
  %v338 = vunpack.c.l.bf16 %v80
  %v339 = vunpack.c.h.bf16 %v80
  %v340 = vunpack.c.l.bf16 %v81
  %v341 = vunpack.c.h.bf16 %v81
  %v342 = vunpack.c.l.bf16 %v82
  %v343 = vunpack.c.h.bf16 %v82
  %v344 = vunpack.c.l.bf16 %v83
  %v345 = vunpack.c.h.bf16 %v83
  %v346 = vunpack.c.l.bf16 %v84
  %v347 = vunpack.c.h.bf16 %v84
  %v348 = vunpack.c.l.bf16 %v85
  %v349 = vunpack.c.h.bf16 %v85
  %v350 = vunpack.c.l.bf16 %v86
  %v351 = vunpack.c.h.bf16 %v86
  %v352 = vunpack.c.l.bf16 %v87
  %v353 = vunpack.c.h.bf16 %v87
  %v354 = vunpack.c.l.bf16 %v88
  %v355 = vunpack.c.h.bf16 %v88
  %v356 = vunpack.c.l.bf16 %v89
  %v357 = vunpack.c.h.bf16 %v89
  %v358 = vunpack.c.l.bf16 %v90
  %v359 = vunpack.c.h.bf16 %v90
  %v360 = vunpack.c.l.bf16 %v91
  %v361 = vunpack.c.h.bf16 %v91
  %v362 = vunpack.c.l.bf16 %v92
  %v363 = vunpack.c.h.bf16 %v92
  %v364 = vunpack.c.l.bf16 %v93
  %v365 = vunpack.c.h.bf16 %v93
  %v366 = vunpack.c.l.bf16 %v94
  %v367 = vunpack.c.h.bf16 %v94
  %v368 = vunpack.c.l.bf16 %v95
  %v369 = vunpack.c.h.bf16 %v95
  %v370 = vunpack.c.l.bf16 %v96
  %v371 = vunpack.c.h.bf16 %v96
  %v372 = vunpack.c.l.bf16 %v97
  %v373 = vunpack.c.h.bf16 %v97
  %v374 = vunpack.c.l.bf16 %v98
  %v375 = vunpack.c.h.bf16 %v98
  %v376 = vunpack.c.l.bf16 %v99
  %v377 = vunpack.c.h.bf16 %v99
  %v378 = vunpack.c.l.bf16 %v100
  %v379 = vunpack.c.h.bf16 %v100
  %v380 = vunpack.c.l.bf16 %v101
  %v381 = vunpack.c.h.bf16 %v101
  %v382 = vunpack.c.l.bf16 %v102
  %v383 = vunpack.c.h.bf16 %v102
  %v384 = vunpack.c.l.bf16 %v103
  %v385 = vunpack.c.h.bf16 %v103
  %v386 = vunpack.c.l.bf16 %v104
  %v387 = vunpack.c.h.bf16 %v104
  %v388 = vunpack.c.l.bf16 %v105
  %v389 = vunpack.c.h.bf16 %v105
  %v390 = vunpack.c.l.bf16 %v106
  %v391 = vunpack.c.h.bf16 %v106
  %v392 = vunpack.c.l.bf16 %v107
  %v393 = vunpack.c.h.bf16 %v107
  %v394 = vunpack.c.l.bf16 %v108
  %v395 = vunpack.c.h.bf16 %v108
  %v396 = vunpack.c.l.bf16 %v109
  %v397 = vunpack.c.h.bf16 %v109
  %v398 = vunpack.c.l.bf16 %v110
  %v399 = vunpack.c.h.bf16 %v110
  %v400 = vunpack.c.l.bf16 %v111
  %v401 = vunpack.c.h.bf16 %v111
  %v402 = vunpack.c.l.bf16 %v112
  %v403 = vunpack.c.h.bf16 %v112
  %v404 = vunpack.c.l.bf16 %v113
  %v405 = vunpack.c.h.bf16 %v113
  %v406 = vunpack.c.l.bf16 %v114
  %v407 = vunpack.c.h.bf16 %v114
  %v408 = vunpack.c.l.bf16 %v115
  %v409 = vunpack.c.h.bf16 %v115
  %v410 = vunpack.c.l.bf16 %v116
  %v411 = vunpack.c.h.bf16 %v116
  %v412 = vunpack.c.l.bf16 %v117
  %v413 = vunpack.c.h.bf16 %v117
  %v414 = vunpack.c.l.bf16 %v118
  %v415 = vunpack.c.h.bf16 %v118
  %v416 = vunpack.c.l.bf16 %v119
  %v417 = vunpack.c.h.bf16 %v119
  %v418 = vunpack.c.l.bf16 %v120
  %v419 = vunpack.c.h.bf16 %v120
  %v420 = vunpack.c.l.bf16 %v121
  %v421 = vunpack.c.h.bf16 %v121
  %v422 = vunpack.c.l.bf16 %v122
  %v423 = vunpack.c.h.bf16 %v122
  %v424 = vunpack.c.l.bf16 %v123
  %v425 = vunpack.c.h.bf16 %v123
  %v426 = vunpack.c.l.bf16 %v124
  %v427 = vunpack.c.h.bf16 %v124
  %v428 = vunpack.c.l.bf16 %v125
  %v429 = vunpack.c.h.bf16 %v125
  %v430 = vunpack.c.l.bf16 %v126
  %v431 = vunpack.c.h.bf16 %v126
  %v432 = vunpack.c.l.bf16 %v127
  %v433 = vunpack.c.h.bf16 %v127
  %v434 = vunpack.c.l.bf16 %v128
  %v435 = vunpack.c.h.bf16 %v128
  %v436 = vunpack.c.l.bf16 %v129
  %v437 = vunpack.c.h.bf16 %v129
  %v438 = vunpack.c.l.bf16 %v130
  %v439 = vunpack.c.h.bf16 %v130
  %v440 = vunpack.c.l.bf16 %v131
  %v441 = vunpack.c.h.bf16 %v131
  %v442 = vunpack.c.l.bf16 %v132
  %v443 = vunpack.c.h.bf16 %v132
  %v444 = vunpack.c.l.bf16 %v133
  %v445 = vunpack.c.h.bf16 %v133
  %v446 = vunpack.c.l.bf16 %v134
  %v447 = vunpack.c.h.bf16 %v134
  %v448 = vunpack.c.l.bf16 %v135
  %v449 = vunpack.c.h.bf16 %v135
  %v450 = vunpack.c.l.bf16 %v136
  %v451 = vunpack.c.h.bf16 %v136
  %v452 = vunpack.c.l.bf16 %v137
  %v453 = vunpack.c.h.bf16 %v137
  %v454 = vunpack.c.l.bf16 %v138
  %v455 = vunpack.c.h.bf16 %v138
  %v456 = vunpack.c.l.bf16 %v139
  %v457 = vunpack.c.h.bf16 %v139
  %v458 = vunpack.c.l.bf16 %v140
  %v459 = vunpack.c.h.bf16 %v140
  %v460 = vunpack.c.l.bf16 %v141
  %v461 = vunpack.c.h.bf16 %v141
  %v462 = vunpack.c.l.bf16 %v142
  %v463 = vunpack.c.h.bf16 %v142
  %v464 = vunpack.c.l.bf16 %v143
  %v465 = vunpack.c.h.bf16 %v143
  %v466 = vunpack.c.l.bf16 %v144
  %v467 = vunpack.c.h.bf16 %v144
  %v468 = vunpack.c.l.bf16 %v145
  %v469 = vunpack.c.h.bf16 %v145
  %v470 = vunpack.c.l.bf16 %v146
  %v471 = vunpack.c.h.bf16 %v146
  %v472 = vunpack.c.l.bf16 %v147
  %v473 = vunpack.c.h.bf16 %v147
  %v474 = vunpack.c.l.bf16 %v148
  %v475 = vunpack.c.h.bf16 %v148
  %v476 = vunpack.c.l.bf16 %v149
  %v477 = vunpack.c.h.bf16 %v149
  %v478 = vunpack.c.l.bf16 %v150
  %v479 = vunpack.c.h.bf16 %v150
  %v480 = vunpack.c.l.bf16 %v151
  %v481 = vunpack.c.h.bf16 %v151
  %v482 = vunpack.c.l.bf16 %v152
  %v483 = vunpack.c.h.bf16 %v152
  %v484 = vunpack.c.l.bf16 %v153
  %v485 = vunpack.c.h.bf16 %v153
  %v486 = vunpack.c.l.bf16 %v154
  %v487 = vunpack.c.h.bf16 %v154
  %v488 = vunpack.c.l.bf16 %v155
  %v489 = vunpack.c.h.bf16 %v155
  %v490 = vunpack.c.l.bf16 %v156
  %v491 = vunpack.c.h.bf16 %v156
  %v492 = vunpack.c.l.bf16 %v157
  %v493 = vunpack.c.h.bf16 %v157
  %v494 = vunpack.c.l.bf16 %v158
  %v495 = vunpack.c.h.bf16 %v158
  %v496 = vunpack.c.l.bf16 %v159
  %v497 = vunpack.c.h.bf16 %v159
  %v498 = vunpack.c.l.bf16 %v160
  %v499 = vunpack.c.h.bf16 %v160
  %v500 = vunpack.c.l.bf16 %v161
  %v501 = vunpack.c.h.bf16 %v161
  %v502 = vunpack.c.l.bf16 %v162
  %v503 = vunpack.c.h.bf16 %v162
  %v504 = vunpack.c.l.bf16 %v163
  %v505 = vunpack.c.h.bf16 %v163
  %v506 = vunpack.c.l.bf16 %v164
  %v507 = vunpack.c.h.bf16 %v164
  %v508 = vunpack.c.l.bf16 %v165
  %v509 = vunpack.c.h.bf16 %v165
  %v510 = vunpack.c.l.bf16 %v166
  %v511 = vunpack.c.h.bf16 %v166
  %v512 = vunpack.c.l.bf16 %v167
  %v513 = vunpack.c.h.bf16 %v167
  %v514 = vunpack.c.l.bf16 %v168
  %v515 = vunpack.c.h.bf16 %v168
  %v516 = vunpack.c.l.bf16 %v169
  %v517 = vunpack.c.h.bf16 %v169
  %v518 = vunpack.c.l.bf16 %v170
  %v519 = vunpack.c.h.bf16 %v170
  %v520 = vunpack.c.l.bf16 %v171
  %v521 = vunpack.c.h.bf16 %v171
  %v522 = vunpack.c.l.bf16 %v172
  %v523 = vunpack.c.h.bf16 %v172
  %v524 = vunpack.c.l.bf16 %v173
  %v525 = vunpack.c.h.bf16 %v173
  %v526 = vunpack.c.l.bf16 %v174
  %v527 = vunpack.c.h.bf16 %v174
  %v528 = vunpack.c.l.bf16 %v175
  %v529 = vunpack.c.h.bf16 %v175
  %v530 = vunpack.c.l.bf16 %v176
  %v531 = vunpack.c.h.bf16 %v176
  %v532 = vunpack.c.l.bf16 %v177
  %v533 = vunpack.c.h.bf16 %v177
  %v534 = vunpack.c.l.bf16 %v178
  %v535 = vunpack.c.h.bf16 %v178
  %v536 = vunpack.c.l.bf16 %v179
  %v537 = vunpack.c.h.bf16 %v179
  %v538 = vunpack.c.l.bf16 %v180
  %v539 = vunpack.c.h.bf16 %v180
  %v540 = vunpack.c.l.bf16 %v181
  %v541 = vunpack.c.h.bf16 %v181
  %v542 = vunpack.c.l.bf16 %v182
  %v543 = vunpack.c.h.bf16 %v182
  %v544 = vunpack.c.l.bf16 %v183
  %v545 = vunpack.c.h.bf16 %v183
  %v546 = vunpack.c.l.bf16 %v184
  %v547 = vunpack.c.h.bf16 %v184
  %v548 = vunpack.c.l.bf16 %v185
  %v549 = vunpack.c.h.bf16 %v185
  %v550 = vunpack.c.l.bf16 %v186
  %v551 = vunpack.c.h.bf16 %v186
  %v552 = vunpack.c.l.bf16 %v187
  %v553 = vunpack.c.h.bf16 %v187
  %v554 = vunpack.c.l.bf16 %v188
  %v555 = vunpack.c.h.bf16 %v188
  %v556 = vunpack.c.l.bf16 %v189
  %v557 = vunpack.c.h.bf16 %v189
  %v558 = vunpack.c.l.bf16 %v190
  %v559 = vunpack.c.h.bf16 %v190
  %v560 = vunpack.c.l.bf16 %v191
  %v561 = vunpack.c.h.bf16 %v191
  %v562 = vunpack.c.l.bf16 %v192
  %v563 = vunpack.c.h.bf16 %v192
  %v564 = vunpack.c.l.bf16 %v193
  %v565 = vunpack.c.h.bf16 %v193
  %v566 = vunpack.c.l.bf16 %v194
  %v567 = vunpack.c.h.bf16 %v194
  %v568 = vunpack.c.l.bf16 %v195
  %v569 = vunpack.c.h.bf16 %v195
  %v570 = vunpack.c.l.bf16 %v196
  %v571 = vunpack.c.h.bf16 %v196
  %v572 = vunpack.c.l.bf16 %v197
  %v573 = vunpack.c.h.bf16 %v197
  %v574 = vunpack.c.l.bf16 %v198
  %v575 = vunpack.c.h.bf16 %v198
  %v576 = vunpack.c.l.bf16 %v199
  %v577 = vunpack.c.h.bf16 %v199
  %v578 = vunpack.c.l.bf16 %v200
  %v579 = vunpack.c.h.bf16 %v200
  %v580 = vunpack.c.l.bf16 %v201
  %v581 = vunpack.c.h.bf16 %v201
  %v582 = vunpack.c.l.bf16 %v202
  %v583 = vunpack.c.h.bf16 %v202
  %v584 = vunpack.c.l.bf16 %v203
  %v585 = vunpack.c.h.bf16 %v203
  %v586 = vunpack.c.l.bf16 %v204
  %v587 = vunpack.c.h.bf16 %v204
  %v588 = vunpack.c.l.bf16 %v205
  %v589 = vunpack.c.h.bf16 %v205
  %v590 = vld [vmem:[%s1] sm:$0xff]
  %v591 = vld [vmem:[%s1 + $0x8] sm:$0xf]
  %v594 = vlaneseq
  %v595 = vshrl.u32 %v594, 7
  %v596 = vsub.s32 0, %v595
  %v597 = vrot.slane %v590, %v596
  %v598 = vlaneseq
  %v599 = vshrl.u32 %v598, 7
  %v600 = vsub.s32 1, %v599
  %v601 = vrot.slane %v590, %v600
  %v602 = vlaneseq
  %v603 = vshrl.u32 %v602, 7
  %v604 = vsub.s32 2, %v603
  %v605 = vrot.slane %v590, %v604
  %v606 = vlaneseq
  %v607 = vshrl.u32 %v606, 7
  %v608 = vsub.s32 3, %v607
  %v609 = vrot.slane %v590, %v608
  %v610 = vlaneseq
  %v611 = vshrl.u32 %v610, 7
  %v612 = vsub.s32 4, %v611
  %v613 = vrot.slane %v590, %v612
  %v614 = vlaneseq
  %v615 = vshrl.u32 %v614, 7
  %v616 = vsub.s32 5, %v615
  %v617 = vrot.slane %v590, %v616
  %v618 = vlaneseq
  %v619 = vshrl.u32 %v618, 7
  %v620 = vsub.s32 6, %v619
  %v621 = vrot.slane %v590, %v620
  %v622 = vlaneseq
  %v623 = vshrl.u32 %v622, 7
  %v624 = vsub.s32 7, %v623
  %v625 = vrot.slane %v590, %v624
  %v626 = vlaneseq
  %v627 = vshrl.u32 %v626, 7
  %v628 = vsub.s32 0, %v627
  %v629 = vrot.slane %v591, %v628
  %v630 = vlaneseq
  %v631 = vshrl.u32 %v630, 7
  %v632 = vsub.s32 1, %v631
  %v633 = vrot.slane %v591, %v632
  %v634 = vlaneseq
  %v635 = vshrl.u32 %v634, 7
  %v636 = vsub.s32 2, %v635
  %v637 = vrot.slane %v591, %v636
  %v638 = vlaneseq
  %v639 = vshrl.u32 %v638, 7
  %v640 = vsub.s32 3, %v639
  %v641 = vrot.slane %v591, %v640
  %v654 = vmul.f32 %v206, %v597
  %v655 = vmul.f32 %v207, %v601
  %v656 = vmul.f32 %v208, %v605
  %v657 = vmul.f32 %v209, %v609
  %v658 = vmul.f32 %v210, %v613
  %v659 = vmul.f32 %v211, %v617
  %v660 = vmul.f32 %v212, %v621
  %v661 = vmul.f32 %v213, %v625
  %v662 = vmul.f32 %v214, %v629
  %v663 = vmul.f32 %v215, %v633
  %v664 = vmul.f32 %v216, %v637
  %v665 = vmul.f32 %v217, %v641
  %v666 = vmul.f32 %v218, %v597
  %v667 = vmul.f32 %v219, %v601
  %v668 = vmul.f32 %v220, %v605
  %v669 = vmul.f32 %v221, %v609
  %v670 = vmul.f32 %v222, %v613
  %v671 = vmul.f32 %v223, %v617
  %v672 = vmul.f32 %v224, %v621
  %v673 = vmul.f32 %v225, %v625
  %v674 = vmul.f32 %v226, %v629
  %v675 = vmul.f32 %v227, %v633
  %v676 = vmul.f32 %v228, %v637
  %v677 = vmul.f32 %v229, %v641
  %v678 = vmul.f32 %v230, %v597
  %v679 = vmul.f32 %v231, %v601
  %v680 = vmul.f32 %v232, %v605
  %v681 = vmul.f32 %v233, %v609
  %v682 = vmul.f32 %v234, %v613
  %v683 = vmul.f32 %v235, %v617
  %v684 = vmul.f32 %v236, %v621
  %v685 = vmul.f32 %v237, %v625
  %v686 = vmul.f32 %v238, %v629
  %v687 = vmul.f32 %v239, %v633
  %v688 = vmul.f32 %v240, %v637
  %v689 = vmul.f32 %v241, %v641
  %v690 = vmul.f32 %v242, %v597
  %v691 = vmul.f32 %v243, %v601
  %v692 = vmul.f32 %v244, %v605
  %v693 = vmul.f32 %v245, %v609
  %v694 = vmul.f32 %v246, %v613
  %v695 = vmul.f32 %v247, %v617
  %v696 = vmul.f32 %v248, %v621
  %v697 = vmul.f32 %v249, %v625
  %v698 = vmul.f32 %v250, %v629
  %v699 = vmul.f32 %v251, %v633
  %v700 = vmul.f32 %v252, %v637
  %v701 = vmul.f32 %v253, %v641
  %v702 = vmul.f32 %v254, %v597
  %v703 = vmul.f32 %v255, %v601
  %v704 = vmul.f32 %v256, %v605
  %v705 = vmul.f32 %v257, %v609
  %v706 = vmul.f32 %v258, %v613
  %v707 = vmul.f32 %v259, %v617
  %v708 = vmul.f32 %v260, %v621
  %v709 = vmul.f32 %v261, %v625
  %v710 = vmul.f32 %v262, %v629
  %v711 = vmul.f32 %v263, %v633
  %v712 = vmul.f32 %v264, %v637
  %v713 = vmul.f32 %v265, %v641
  %v714 = vmul.f32 %v266, %v597
  %v715 = vmul.f32 %v267, %v601
  %v716 = vmul.f32 %v268, %v605
  %v717 = vmul.f32 %v269, %v609
  %v718 = vmul.f32 %v270, %v613
  %v719 = vmul.f32 %v271, %v617
  %v720 = vmul.f32 %v272, %v621
  %v721 = vmul.f32 %v273, %v625
  %v722 = vmul.f32 %v274, %v629
  %v723 = vmul.f32 %v275, %v633
  %v724 = vmul.f32 %v276, %v637
  %v725 = vmul.f32 %v277, %v641
  %v726 = vmul.f32 %v278, %v597
  %v727 = vmul.f32 %v279, %v601
  %v728 = vmul.f32 %v280, %v605
  %v729 = vmul.f32 %v281, %v609
  %v730 = vmul.f32 %v282, %v613
  %v731 = vmul.f32 %v283, %v617
  %v732 = vmul.f32 %v284, %v621
  %v733 = vmul.f32 %v285, %v625
  %v734 = vmul.f32 %v286, %v629
  %v735 = vmul.f32 %v287, %v633
  %v736 = vmul.f32 %v288, %v637
  %v737 = vmul.f32 %v289, %v641
  %v738 = vmul.f32 %v290, %v597
  %v739 = vmul.f32 %v291, %v601
  %v740 = vmul.f32 %v292, %v605
  %v741 = vmul.f32 %v293, %v609
  %v742 = vmul.f32 %v294, %v613
  %v743 = vmul.f32 %v295, %v617
  %v744 = vmul.f32 %v296, %v621
  %v745 = vmul.f32 %v297, %v625
  %v746 = vmul.f32 %v298, %v629
  %v747 = vmul.f32 %v299, %v633
  %v748 = vmul.f32 %v300, %v637
  %v749 = vmul.f32 %v301, %v641
  %v750 = vmul.f32 %v302, %v597
  %v751 = vmul.f32 %v303, %v601
  %v752 = vmul.f32 %v304, %v605
  %v753 = vmul.f32 %v305, %v609
  %v754 = vmul.f32 %v306, %v613
  %v755 = vmul.f32 %v307, %v617
  %v756 = vmul.f32 %v308, %v621
  %v757 = vmul.f32 %v309, %v625
  %v758 = vmul.f32 %v310, %v629
  %v759 = vmul.f32 %v311, %v633
  %v760 = vmul.f32 %v312, %v637
  %v761 = vmul.f32 %v313, %v641
  %v762 = vmul.f32 %v314, %v597
  %v763 = vmul.f32 %v315, %v601
  %v764 = vmul.f32 %v316, %v605
  %v765 = vmul.f32 %v317, %v609
  %v766 = vmul.f32 %v318, %v613
  %v767 = vmul.f32 %v319, %v617
  %v768 = vmul.f32 %v320, %v621
  %v769 = vmul.f32 %v321, %v625
  %v770 = vmul.f32 %v322, %v629
  %v771 = vmul.f32 %v323, %v633
  %v772 = vmul.f32 %v324, %v637
  %v773 = vmul.f32 %v325, %v641
  %v774 = vmul.f32 %v326, %v597
  %v775 = vmul.f32 %v327, %v601
  %v776 = vmul.f32 %v328, %v605
  %v777 = vmul.f32 %v329, %v609
  %v778 = vmul.f32 %v330, %v613
  %v779 = vmul.f32 %v331, %v617
  %v780 = vmul.f32 %v332, %v621
  %v781 = vmul.f32 %v333, %v625
  %v782 = vmul.f32 %v334, %v629
  %v783 = vmul.f32 %v335, %v633
  %v784 = vmul.f32 %v336, %v637
  %v785 = vmul.f32 %v337, %v641
  %v786 = vmul.f32 %v338, %v597
  %v787 = vmul.f32 %v339, %v601
  %v788 = vmul.f32 %v340, %v605
  %v789 = vmul.f32 %v341, %v609
  %v790 = vmul.f32 %v342, %v613
  %v791 = vmul.f32 %v343, %v617
  %v792 = vmul.f32 %v344, %v621
  %v793 = vmul.f32 %v345, %v625
  %v794 = vmul.f32 %v346, %v629
  %v795 = vmul.f32 %v347, %v633
  %v796 = vmul.f32 %v348, %v637
  %v797 = vmul.f32 %v349, %v641
  %v798 = vmul.f32 %v350, %v597
  %v799 = vmul.f32 %v351, %v601
  %v800 = vmul.f32 %v352, %v605
  %v801 = vmul.f32 %v353, %v609
  %v802 = vmul.f32 %v354, %v613
  %v803 = vmul.f32 %v355, %v617
  %v804 = vmul.f32 %v356, %v621
  %v805 = vmul.f32 %v357, %v625
  %v806 = vmul.f32 %v358, %v629
  %v807 = vmul.f32 %v359, %v633
  %v808 = vmul.f32 %v360, %v637
  %v809 = vmul.f32 %v361, %v641
  %v810 = vmul.f32 %v362, %v597
  %v811 = vmul.f32 %v363, %v601
  %v812 = vmul.f32 %v364, %v605
  %v813 = vmul.f32 %v365, %v609
  %v814 = vmul.f32 %v366, %v613
  %v815 = vmul.f32 %v367, %v617
  %v816 = vmul.f32 %v368, %v621
  %v817 = vmul.f32 %v369, %v625
  %v818 = vmul.f32 %v370, %v629
  %v819 = vmul.f32 %v371, %v633
  %v820 = vmul.f32 %v372, %v637
  %v821 = vmul.f32 %v373, %v641
  %v822 = vmul.f32 %v374, %v597
  %v823 = vmul.f32 %v375, %v601
  %v824 = vmul.f32 %v376, %v605
  %v825 = vmul.f32 %v377, %v609
  %v826 = vmul.f32 %v378, %v613
  %v827 = vmul.f32 %v379, %v617
  %v828 = vmul.f32 %v380, %v621
  %v829 = vmul.f32 %v381, %v625
  %v830 = vmul.f32 %v382, %v629
  %v831 = vmul.f32 %v383, %v633
  %v832 = vmul.f32 %v384, %v637
  %v833 = vmul.f32 %v385, %v641
  %v834 = vmul.f32 %v386, %v597
  %v835 = vmul.f32 %v387, %v601
  %v836 = vmul.f32 %v388, %v605
  %v837 = vmul.f32 %v389, %v609
  %v838 = vmul.f32 %v390, %v613
  %v839 = vmul.f32 %v391, %v617
  %v840 = vmul.f32 %v392, %v621
  %v841 = vmul.f32 %v393, %v625
  %v842 = vmul.f32 %v394, %v629
  %v843 = vmul.f32 %v395, %v633
  %v844 = vmul.f32 %v396, %v637
  %v845 = vmul.f32 %v397, %v641
  %v846 = vmul.f32 %v398, %v597
  %v847 = vmul.f32 %v399, %v601
  %v848 = vmul.f32 %v400, %v605
  %v849 = vmul.f32 %v401, %v609
  %v850 = vmul.f32 %v402, %v613
  %v851 = vmul.f32 %v403, %v617
  %v852 = vmul.f32 %v404, %v621
  %v853 = vmul.f32 %v405, %v625
  %v854 = vmul.f32 %v406, %v629
  %v855 = vmul.f32 %v407, %v633
  %v856 = vmul.f32 %v408, %v637
  %v857 = vmul.f32 %v409, %v641
  %v858 = vmul.f32 %v410, %v597
  %v859 = vmul.f32 %v411, %v601
  %v860 = vmul.f32 %v412, %v605
  %v861 = vmul.f32 %v413, %v609
  %v862 = vmul.f32 %v414, %v613
  %v863 = vmul.f32 %v415, %v617
  %v864 = vmul.f32 %v416, %v621
  %v865 = vmul.f32 %v417, %v625
  %v866 = vmul.f32 %v418, %v629
  %v867 = vmul.f32 %v419, %v633
  %v868 = vmul.f32 %v420, %v637
  %v869 = vmul.f32 %v421, %v641
  %v870 = vmul.f32 %v422, %v597
  %v871 = vmul.f32 %v423, %v601
  %v872 = vmul.f32 %v424, %v605
  %v873 = vmul.f32 %v425, %v609
  %v874 = vmul.f32 %v426, %v613
  %v875 = vmul.f32 %v427, %v617
  %v876 = vmul.f32 %v428, %v621
  %v877 = vmul.f32 %v429, %v625
  %v878 = vmul.f32 %v430, %v629
  %v879 = vmul.f32 %v431, %v633
  %v880 = vmul.f32 %v432, %v637
  %v881 = vmul.f32 %v433, %v641
  %v882 = vmul.f32 %v434, %v597
  %v883 = vmul.f32 %v435, %v601
  %v884 = vmul.f32 %v436, %v605
  %v885 = vmul.f32 %v437, %v609
  %v886 = vmul.f32 %v438, %v613
  %v887 = vmul.f32 %v439, %v617
  %v888 = vmul.f32 %v440, %v621
  %v889 = vmul.f32 %v441, %v625
  %v890 = vmul.f32 %v442, %v629
  %v891 = vmul.f32 %v443, %v633
  %v892 = vmul.f32 %v444, %v637
  %v893 = vmul.f32 %v445, %v641
  %v894 = vmul.f32 %v446, %v597
  %v895 = vmul.f32 %v447, %v601
  %v896 = vmul.f32 %v448, %v605
  %v897 = vmul.f32 %v449, %v609
  %v898 = vmul.f32 %v450, %v613
  %v899 = vmul.f32 %v451, %v617
  %v900 = vmul.f32 %v452, %v621
  %v901 = vmul.f32 %v453, %v625
  %v902 = vmul.f32 %v454, %v629
  %v903 = vmul.f32 %v455, %v633
  %v904 = vmul.f32 %v456, %v637
  %v905 = vmul.f32 %v457, %v641
  %v906 = vmul.f32 %v458, %v597
  %v907 = vmul.f32 %v459, %v601
  %v908 = vmul.f32 %v460, %v605
  %v909 = vmul.f32 %v461, %v609
  %v910 = vmul.f32 %v462, %v613
  %v911 = vmul.f32 %v463, %v617
  %v912 = vmul.f32 %v464, %v621
  %v913 = vmul.f32 %v465, %v625
  %v914 = vmul.f32 %v466, %v629
  %v915 = vmul.f32 %v467, %v633
  %v916 = vmul.f32 %v468, %v637
  %v917 = vmul.f32 %v469, %v641
  %v918 = vmul.f32 %v470, %v597
  %v919 = vmul.f32 %v471, %v601
  %v920 = vmul.f32 %v472, %v605
  %v921 = vmul.f32 %v473, %v609
  %v922 = vmul.f32 %v474, %v613
  %v923 = vmul.f32 %v475, %v617
  %v924 = vmul.f32 %v476, %v621
  %v925 = vmul.f32 %v477, %v625
  %v926 = vmul.f32 %v478, %v629
  %v927 = vmul.f32 %v479, %v633
  %v928 = vmul.f32 %v480, %v637
  %v929 = vmul.f32 %v481, %v641
  %v930 = vmul.f32 %v482, %v597
  %v931 = vmul.f32 %v483, %v601
  %v932 = vmul.f32 %v484, %v605
  %v933 = vmul.f32 %v485, %v609
  %v934 = vmul.f32 %v486, %v613
  %v935 = vmul.f32 %v487, %v617
  %v936 = vmul.f32 %v488, %v621
  %v937 = vmul.f32 %v489, %v625
  %v938 = vmul.f32 %v490, %v629
  %v939 = vmul.f32 %v491, %v633
  %v940 = vmul.f32 %v492, %v637
  %v941 = vmul.f32 %v493, %v641
  %v942 = vmul.f32 %v494, %v597
  %v943 = vmul.f32 %v495, %v601
  %v944 = vmul.f32 %v496, %v605
  %v945 = vmul.f32 %v497, %v609
  %v946 = vmul.f32 %v498, %v613
  %v947 = vmul.f32 %v499, %v617
  %v948 = vmul.f32 %v500, %v621
  %v949 = vmul.f32 %v501, %v625
  %v950 = vmul.f32 %v502, %v629
  %v951 = vmul.f32 %v503, %v633
  %v952 = vmul.f32 %v504, %v637
  %v953 = vmul.f32 %v505, %v641
  %v954 = vmul.f32 %v506, %v597
  %v955 = vmul.f32 %v507, %v601
  %v956 = vmul.f32 %v508, %v605
  %v957 = vmul.f32 %v509, %v609
  %v958 = vmul.f32 %v510, %v613
  %v959 = vmul.f32 %v511, %v617
  %v960 = vmul.f32 %v512, %v621
  %v961 = vmul.f32 %v513, %v625
  %v962 = vmul.f32 %v514, %v629
  %v963 = vmul.f32 %v515, %v633
  %v964 = vmul.f32 %v516, %v637
  %v965 = vmul.f32 %v517, %v641
  %v966 = vmul.f32 %v518, %v597
  %v967 = vmul.f32 %v519, %v601
  %v968 = vmul.f32 %v520, %v605
  %v969 = vmul.f32 %v521, %v609
  %v970 = vmul.f32 %v522, %v613
  %v971 = vmul.f32 %v523, %v617
  %v972 = vmul.f32 %v524, %v621
  %v973 = vmul.f32 %v525, %v625
  %v974 = vmul.f32 %v526, %v629
  %v975 = vmul.f32 %v527, %v633
  %v976 = vmul.f32 %v528, %v637
  %v977 = vmul.f32 %v529, %v641
  %v978 = vmul.f32 %v530, %v597
  %v979 = vmul.f32 %v531, %v601
  %v980 = vmul.f32 %v532, %v605
  %v981 = vmul.f32 %v533, %v609
  %v982 = vmul.f32 %v534, %v613
  %v983 = vmul.f32 %v535, %v617
  %v984 = vmul.f32 %v536, %v621
  %v985 = vmul.f32 %v537, %v625
  %v986 = vmul.f32 %v538, %v629
  %v987 = vmul.f32 %v539, %v633
  %v988 = vmul.f32 %v540, %v637
  %v989 = vmul.f32 %v541, %v641
  %v990 = vmul.f32 %v542, %v597
  %v991 = vmul.f32 %v543, %v601
  %v992 = vmul.f32 %v544, %v605
  %v993 = vmul.f32 %v545, %v609
  %v994 = vmul.f32 %v546, %v613
  %v995 = vmul.f32 %v547, %v617
  %v996 = vmul.f32 %v548, %v621
  %v997 = vmul.f32 %v549, %v625
  %v998 = vmul.f32 %v550, %v629
  %v999 = vmul.f32 %v551, %v633
  %v1000 = vmul.f32 %v552, %v637
  %v1001 = vmul.f32 %v553, %v641
  %v1002 = vmul.f32 %v554, %v597
  %v1003 = vmul.f32 %v555, %v601
  %v1004 = vmul.f32 %v556, %v605
  %v1005 = vmul.f32 %v557, %v609
  %v1006 = vmul.f32 %v558, %v613
  %v1007 = vmul.f32 %v559, %v617
  %v1008 = vmul.f32 %v560, %v621
  %v1009 = vmul.f32 %v561, %v625
  %v1010 = vmul.f32 %v562, %v629
  %v1011 = vmul.f32 %v563, %v633
  %v1012 = vmul.f32 %v564, %v637
  %v1013 = vmul.f32 %v565, %v641
  %v1014 = vmul.f32 %v566, %v597
  %v1015 = vmul.f32 %v567, %v601
  %v1016 = vmul.f32 %v568, %v605
  %v1017 = vmul.f32 %v569, %v609
  %v1018 = vmul.f32 %v570, %v613
  %v1019 = vmul.f32 %v571, %v617
  %v1020 = vmul.f32 %v572, %v621
  %v1021 = vmul.f32 %v573, %v625
  %v1022 = vmul.f32 %v574, %v629
  %v1023 = vmul.f32 %v575, %v633
  %v1024 = vmul.f32 %v576, %v637
  %v1025 = vmul.f32 %v577, %v641
  %v1026 = vmul.f32 %v578, %v597
  %v1027 = vmul.f32 %v579, %v601
  %v1028 = vmul.f32 %v580, %v605
  %v1029 = vmul.f32 %v581, %v609
  %v1030 = vmul.f32 %v582, %v613
  %v1031 = vmul.f32 %v583, %v617
  %v1032 = vmul.f32 %v584, %v621
  %v1033 = vmul.f32 %v585, %v625
  %v1034 = vmul.f32 %v586, %v629
  %v1035 = vmul.f32 %v587, %v633
  %v1036 = vmul.f32 %v588, %v637
  %v1037 = vmul.f32 %v589, %v641
  %v1038 = vld [vmem:[%s0] sm:$0xff]
  %v1039 = vld [vmem:[%s0 + $0x8] sm:$0xff]
  %v1040 = vld [vmem:[%s0 + $0x10] sm:$0xff]
  %v1041 = vld [vmem:[%s0 + $0x18] sm:$0xff]
  %v1042 = vld [vmem:[%s0 + $0x20] sm:$0xff]
  %v1043 = vld [vmem:[%s0 + $0x28] sm:$0xff]
  %v1044 = vld [vmem:[%s0 + $0x30] sm:$0xff]
  %v1045 = vld [vmem:[%s0 + $0x38] sm:$0xff]
  %v1046 = vld [vmem:[%s0 + $0x40] sm:$0xff]
  %v1047 = vld [vmem:[%s0 + $0x48] sm:$0xff]
  %v1048 = vld [vmem:[%s0 + $0x50] sm:$0xff]
  %v1049 = vld [vmem:[%s0 + $0x58] sm:$0xff]
  %v1050 = vld [vmem:[%s0 + $0x60] sm:$0xff]
  %v1051 = vld [vmem:[%s0 + $0x68] sm:$0xff]
  %v1052 = vld [vmem:[%s0 + $0x70] sm:$0xff]
  %v1053 = vld [vmem:[%s0 + $0x78] sm:$0xff]
  %v1054 = vld [vmem:[%s0 + $0x80] sm:$0xff]
  %v1055 = vld [vmem:[%s0 + $0x88] sm:$0xff]
  %v1056 = vld [vmem:[%s0 + $0x90] sm:$0xff]
  %v1057 = vld [vmem:[%s0 + $0x98] sm:$0xff]
  %v1058 = vld [vmem:[%s0 + $0xa0] sm:$0xff]
  %v1059 = vld [vmem:[%s0 + $0xa8] sm:$0xff]
  %v1060 = vld [vmem:[%s0 + $0xb0] sm:$0xff]
  %v1061 = vld [vmem:[%s0 + $0xb8] sm:$0xff]
  %v1062 = vld [vmem:[%s0 + $0xc0] sm:$0xff]
  %v1063 = vld [vmem:[%s0 + $0xc8] sm:$0xff]
  %v1064 = vld [vmem:[%s0 + $0xd0] sm:$0xff]
  %v1065 = vld [vmem:[%s0 + $0xd8] sm:$0xff]
  %v1066 = vld [vmem:[%s0 + $0xe0] sm:$0xff]
  %v1067 = vld [vmem:[%s0 + $0xe8] sm:$0xff]
  %v1068 = vld [vmem:[%s0 + $0xf0] sm:$0xff]
  %v1069 = vld [vmem:[%s0 + $0xf8] sm:$0xff]
  %v1070 = vld [vmem:[%s0 + $0x100] sm:$0xff]
  %v1071 = vld [vmem:[%s0 + $0x108] sm:$0xff]
  %v1072 = vld [vmem:[%s0 + $0x110] sm:$0xff]
  %v1073 = vld [vmem:[%s0 + $0x118] sm:$0xff]
  %v1074 = vld [vmem:[%s0 + $0x120] sm:$0xff]
  %v1075 = vld [vmem:[%s0 + $0x128] sm:$0xff]
  %v1076 = vld [vmem:[%s0 + $0x130] sm:$0xff]
  %v1077 = vld [vmem:[%s0 + $0x138] sm:$0xff]
  %v1078 = vld [vmem:[%s0 + $0x140] sm:$0xff]
  %v1079 = vld [vmem:[%s0 + $0x148] sm:$0xff]
  %v1080 = vld [vmem:[%s0 + $0x150] sm:$0xff]
  %v1081 = vld [vmem:[%s0 + $0x158] sm:$0xff]
  %v1082 = vld [vmem:[%s0 + $0x160] sm:$0xff]
  %v1083 = vld [vmem:[%s0 + $0x168] sm:$0xff]
  %v1084 = vld [vmem:[%s0 + $0x170] sm:$0xff]
  %v1085 = vld [vmem:[%s0 + $0x178] sm:$0xff]
  %v1086 = vld [vmem:[%s0 + $0x180] sm:$0xff]
  %v1087 = vld [vmem:[%s0 + $0x188] sm:$0xff]
  %v1088 = vld [vmem:[%s0 + $0x190] sm:$0xff]
  %v1089 = vld [vmem:[%s0 + $0x198] sm:$0xff]
  %v1090 = vld [vmem:[%s0 + $0x1a0] sm:$0xff]
  %v1091 = vld [vmem:[%s0 + $0x1a8] sm:$0xff]
  %v1092 = vld [vmem:[%s0 + $0x1b0] sm:$0xff]
  %v1093 = vld [vmem:[%s0 + $0x1b8] sm:$0xff]
  %v1094 = vld [vmem:[%s0 + $0x1c0] sm:$0xff]
  %v1095 = vld [vmem:[%s0 + $0x1c8] sm:$0xff]
  %v1096 = vld [vmem:[%s0 + $0x1d0] sm:$0xff]
  %v1097 = vld [vmem:[%s0 + $0x1d8] sm:$0xff]
  %v1098 = vld [vmem:[%s0 + $0x1e0] sm:$0xff]
  %v1099 = vld [vmem:[%s0 + $0x1e8] sm:$0xff]
  %v1100 = vld [vmem:[%s0 + $0x1f0] sm:$0xff]
  %v1101 = vld [vmem:[%s0 + $0x1f8] sm:$0xff]
  %v1102 = vld [vmem:[%s0 + $0x200] sm:$0xff]
  %v1103 = vld [vmem:[%s0 + $0x208] sm:$0xff]
  %v1104 = vld [vmem:[%s0 + $0x210] sm:$0xff]
  %v1105 = vld [vmem:[%s0 + $0x218] sm:$0xff]
  %v1106 = vld [vmem:[%s0 + $0x220] sm:$0xff]
  %v1107 = vld [vmem:[%s0 + $0x228] sm:$0xff]
  %v1108 = vld [vmem:[%s0 + $0x230] sm:$0xff]
  %v1109 = vld [vmem:[%s0 + $0x238] sm:$0xff]
  %v1110 = vld [vmem:[%s0 + $0x240] sm:$0xff]
  %v1111 = vld [vmem:[%s0 + $0x248] sm:$0xff]
  %v1112 = vld [vmem:[%s0 + $0x250] sm:$0xff]
  %v1113 = vld [vmem:[%s0 + $0x258] sm:$0xff]
  %v1114 = vld [vmem:[%s0 + $0x260] sm:$0xff]
  %v1115 = vld [vmem:[%s0 + $0x268] sm:$0xff]
  %v1116 = vld [vmem:[%s0 + $0x270] sm:$0xff]
  %v1117 = vld [vmem:[%s0 + $0x278] sm:$0xff]
  %v1118 = vld [vmem:[%s0 + $0x280] sm:$0xff]
  %v1119 = vld [vmem:[%s0 + $0x288] sm:$0xff]
  %v1120 = vld [vmem:[%s0 + $0x290] sm:$0xff]
  %v1121 = vld [vmem:[%s0 + $0x298] sm:$0xff]
  %v1122 = vld [vmem:[%s0 + $0x2a0] sm:$0xff]
  %v1123 = vld [vmem:[%s0 + $0x2a8] sm:$0xff]
  %v1124 = vld [vmem:[%s0 + $0x2b0] sm:$0xff]
  %v1125 = vld [vmem:[%s0 + $0x2b8] sm:$0xff]
  %v1126 = vld [vmem:[%s0 + $0x2c0] sm:$0xff]
  %v1127 = vld [vmem:[%s0 + $0x2c8] sm:$0xff]
  %v1128 = vld [vmem:[%s0 + $0x2d0] sm:$0xff]
  %v1129 = vld [vmem:[%s0 + $0x2d8] sm:$0xff]
  %v1130 = vld [vmem:[%s0 + $0x2e0] sm:$0xff]
  %v1131 = vld [vmem:[%s0 + $0x2e8] sm:$0xff]
  %v1132 = vld [vmem:[%s0 + $0x2f0] sm:$0xff]
  %v1133 = vld [vmem:[%s0 + $0x2f8] sm:$0xff]
  %v1134 = vld [vmem:[%s0 + $0x300] sm:$0xff]
  %v1135 = vld [vmem:[%s0 + $0x308] sm:$0xff]
  %v1136 = vld [vmem:[%s0 + $0x310] sm:$0xff]
  %v1137 = vld [vmem:[%s0 + $0x318] sm:$0xff]
  %v1138 = vld [vmem:[%s0 + $0x320] sm:$0xff]
  %v1139 = vld [vmem:[%s0 + $0x328] sm:$0xff]
  %v1140 = vld [vmem:[%s0 + $0x330] sm:$0xff]
  %v1141 = vld [vmem:[%s0 + $0x338] sm:$0xff]
  %v1142 = vld [vmem:[%s0 + $0x340] sm:$0xff]
  %v1143 = vld [vmem:[%s0 + $0x348] sm:$0xff]
  %v1144 = vld [vmem:[%s0 + $0x350] sm:$0xff]
  %v1145 = vld [vmem:[%s0 + $0x358] sm:$0xff]
  %v1146 = vld [vmem:[%s0 + $0x360] sm:$0xff]
  %v1147 = vld [vmem:[%s0 + $0x368] sm:$0xff]
  %v1148 = vld [vmem:[%s0 + $0x370] sm:$0xff]
  %v1149 = vld [vmem:[%s0 + $0x378] sm:$0xff]
  %v1150 = vld [vmem:[%s0 + $0x380] sm:$0xff]
  %v1151 = vld [vmem:[%s0 + $0x388] sm:$0xff]
  %v1152 = vld [vmem:[%s0 + $0x390] sm:$0xff]
  %v1153 = vld [vmem:[%s0 + $0x398] sm:$0xff]
  %v1154 = vld [vmem:[%s0 + $0x3a0] sm:$0xff]
  %v1155 = vld [vmem:[%s0 + $0x3a8] sm:$0xff]
  %v1156 = vld [vmem:[%s0 + $0x3b0] sm:$0xff]
  %v1157 = vld [vmem:[%s0 + $0x3b8] sm:$0xff]
  %v1158 = vld [vmem:[%s0 + $0x3c0] sm:$0xff]
  %v1159 = vld [vmem:[%s0 + $0x3c8] sm:$0xff]
  %v1160 = vld [vmem:[%s0 + $0x3d0] sm:$0xff]
  %v1161 = vld [vmem:[%s0 + $0x3d8] sm:$0xff]
  %v1162 = vld [vmem:[%s0 + $0x3e0] sm:$0xff]
  %v1163 = vld [vmem:[%s0 + $0x3e8] sm:$0xff]
  %v1164 = vld [vmem:[%s0 + $0x3f0] sm:$0xff]
  %v1165 = vld [vmem:[%s0 + $0x3f8] sm:$0xff]
  %v1166 = vld [vmem:[%s0 + $0x400] sm:$0xff]
  %v1167 = vld [vmem:[%s0 + $0x408] sm:$0xff]
  %v1168 = vld [vmem:[%s0 + $0x410] sm:$0xff]
  %v1169 = vld [vmem:[%s0 + $0x418] sm:$0xff]
  %v1170 = vld [vmem:[%s0 + $0x420] sm:$0xff]
  %v1171 = vld [vmem:[%s0 + $0x428] sm:$0xff]
  %v1172 = vld [vmem:[%s0 + $0x430] sm:$0xff]
  %v1173 = vld [vmem:[%s0 + $0x438] sm:$0xff]
  %v1174 = vld [vmem:[%s0 + $0x440] sm:$0xff]
  %v1175 = vld [vmem:[%s0 + $0x448] sm:$0xff]
  %v1176 = vld [vmem:[%s0 + $0x450] sm:$0xff]
  %v1177 = vld [vmem:[%s0 + $0x458] sm:$0xff]
  %v1178 = vld [vmem:[%s0 + $0x460] sm:$0xff]
  %v1179 = vld [vmem:[%s0 + $0x468] sm:$0xff]
  %v1180 = vld [vmem:[%s0 + $0x470] sm:$0xff]
  %v1181 = vld [vmem:[%s0 + $0x478] sm:$0xff]
  %v1182 = vld [vmem:[%s0 + $0x480] sm:$0xff]
  %v1183 = vld [vmem:[%s0 + $0x488] sm:$0xff]
  %v1184 = vld [vmem:[%s0 + $0x490] sm:$0xff]
  %v1185 = vld [vmem:[%s0 + $0x498] sm:$0xff]
  %v1186 = vld [vmem:[%s0 + $0x4a0] sm:$0xff]
  %v1187 = vld [vmem:[%s0 + $0x4a8] sm:$0xff]
  %v1188 = vld [vmem:[%s0 + $0x4b0] sm:$0xff]
  %v1189 = vld [vmem:[%s0 + $0x4b8] sm:$0xff]
  %v1190 = vld [vmem:[%s0 + $0x4c0] sm:$0xff]
  %v1191 = vld [vmem:[%s0 + $0x4c8] sm:$0xff]
  %v1192 = vld [vmem:[%s0 + $0x4d0] sm:$0xff]
  %v1193 = vld [vmem:[%s0 + $0x4d8] sm:$0xff]
  %v1194 = vld [vmem:[%s0 + $0x4e0] sm:$0xff]
  %v1195 = vld [vmem:[%s0 + $0x4e8] sm:$0xff]
  %v1196 = vld [vmem:[%s0 + $0x4f0] sm:$0xff]
  %v1197 = vld [vmem:[%s0 + $0x4f8] sm:$0xff]
  %v1198 = vld [vmem:[%s0 + $0x500] sm:$0xff]
  %v1199 = vld [vmem:[%s0 + $0x508] sm:$0xff]
  %v1200 = vld [vmem:[%s0 + $0x510] sm:$0xff]
  %v1201 = vld [vmem:[%s0 + $0x518] sm:$0xff]
  %v1202 = vld [vmem:[%s0 + $0x520] sm:$0xff]
  %v1203 = vld [vmem:[%s0 + $0x528] sm:$0xff]
  %v1204 = vld [vmem:[%s0 + $0x530] sm:$0xff]
  %v1205 = vld [vmem:[%s0 + $0x538] sm:$0xff]
  %v1206 = vld [vmem:[%s0 + $0x540] sm:$0xff]
  %v1207 = vld [vmem:[%s0 + $0x548] sm:$0xff]
  %v1208 = vld [vmem:[%s0 + $0x550] sm:$0xff]
  %v1209 = vld [vmem:[%s0 + $0x558] sm:$0xff]
  %v1210 = vld [vmem:[%s0 + $0x560] sm:$0xff]
  %v1211 = vld [vmem:[%s0 + $0x568] sm:$0xff]
  %v1212 = vld [vmem:[%s0 + $0x570] sm:$0xff]
  %v1213 = vld [vmem:[%s0 + $0x578] sm:$0xff]
  %v1214 = vld [vmem:[%s0 + $0x580] sm:$0xff]
  %v1215 = vld [vmem:[%s0 + $0x588] sm:$0xff]
  %v1216 = vld [vmem:[%s0 + $0x590] sm:$0xff]
  %v1217 = vld [vmem:[%s0 + $0x598] sm:$0xff]
  %v1218 = vld [vmem:[%s0 + $0x5a0] sm:$0xff]
  %v1219 = vld [vmem:[%s0 + $0x5a8] sm:$0xff]
  %v1220 = vld [vmem:[%s0 + $0x5b0] sm:$0xff]
  %v1221 = vld [vmem:[%s0 + $0x5b8] sm:$0xff]
  %v1222 = vld [vmem:[%s0 + $0x5c0] sm:$0xff]
  %v1223 = vld [vmem:[%s0 + $0x5c8] sm:$0xff]
  %v1224 = vld [vmem:[%s0 + $0x5d0] sm:$0xff]
  %v1225 = vld [vmem:[%s0 + $0x5d8] sm:$0xff]
  %v1226 = vld [vmem:[%s0 + $0x5e0] sm:$0xff]
  %v1227 = vld [vmem:[%s0 + $0x5e8] sm:$0xff]
  %v1228 = vld [vmem:[%s0 + $0x5f0] sm:$0xff]
  %v1229 = vld [vmem:[%s0 + $0x5f8] sm:$0xff]
  %1230 = vmatprep.subr.mxu0 0.0
  %1231 = vmatpush1.msra.mxu0 %v1038
  %1232 = vmatprep.subr.mxu0 0.0
  %1233 = vmatpush1.msra.mxu0 %v1039
  %1234 = vmatprep.subr.mxu0 0.0
  %1235 = vmatpush1.msra.mxu0 %v1040
  %1236 = vmatprep.subr.mxu0 0.0
  %1237 = vmatpush1.msra.mxu0 %v1041
  %1238 = vmatprep.subr.mxu0 0.0
  %1239 = vmatpush1.msra.mxu0 %v1042
  %1240 = vmatprep.subr.mxu0 0.0
  %1241 = vmatpush1.msra.mxu0 %v1043
  %1242 = vmatprep.subr.mxu0 0.0
  %1243 = vmatpush1.msra.mxu0 %v1044
  %1244 = vmatprep.subr.mxu0 0.0
  %1245 = vmatpush1.msra.mxu0 %v1045
  %1246 = vmatprep.subr.mxu0 0.0
  %1247 = vmatpush1.msra.mxu0 %v1046
  %1248 = vmatprep.subr.mxu0 0.0
  %1249 = vmatpush1.msra.mxu0 %v1047
  %1250 = vmatprep.subr.mxu0 0.0
  %1251 = vmatpush1.msra.mxu0 %v1048
  %1252 = vmatprep.subr.mxu0 0.0
  %1253 = vmatpush1.msra.mxu0 %v1049
  %1254 = vmatprep.subr.mxu0 0.0
  %1255 = vmatpush1.msra.mxu0 %v1050
  %1256 = vmatprep.subr.mxu0 0.0
  %1257 = vmatpush1.msra.mxu0 %v1051
  %1258 = vmatprep.subr.mxu0 0.0
  %1259 = vmatpush1.msra.mxu0 %v1052
  %1260 = vmatprep.subr.mxu0 0.0
  %1261 = vmatpush1.msra.mxu0 %v1053
  %1262 = vmatprep.subr.mxu0 0.0
  %1263 = vmatpush1.msra.mxu0 %v1054
  %1264 = vmatprep.subr.mxu0 0.0
  %1265 = vmatpush1.msra.mxu0 %v1055
  %1266 = vmatprep.subr.mxu0 0.0
  %1267 = vmatpush1.msra.mxu0 %v1056
  %1268 = vmatprep.subr.mxu0 0.0
  %1269 = vmatpush1.msra.mxu0 %v1057
  %1270 = vmatprep.subr.mxu0 0.0
  %1271 = vmatpush1.msra.mxu0 %v1058
  %1272 = vmatprep.subr.mxu0 0.0
  %1273 = vmatpush1.msra.mxu0 %v1059
  %1274 = vmatprep.subr.mxu0 0.0
  %1275 = vmatpush1.msra.mxu0 %v1060
  %1276 = vmatprep.subr.mxu0 0.0
  %1277 = vmatpush1.msra.mxu0 %v1061
  %1278 = vmatprep.subr.mxu0 0.0
  %1279 = vmatpush1.msra.mxu0 %v1062
  %1280 = vmatprep.subr.mxu0 0.0
  %1281 = vmatpush1.msra.mxu0 %v1063
  %1282 = vmatprep.subr.mxu0 0.0
  %1283 = vmatpush1.msra.mxu0 %v1064
  %1284 = vmatprep.subr.mxu0 0.0
  %1285 = vmatpush1.msra.mxu0 %v1065
  %1286 = vmatprep.subr.mxu0 0.0
  %1287 = vmatpush1.msra.mxu0 %v1066
  %1288 = vmatprep.subr.mxu0 0.0
  %1289 = vmatpush1.msra.mxu0 %v1067
  %1290 = vmatprep.subr.mxu0 0.0
  %1291 = vmatpush1.msra.mxu0 %v1068
  %1292 = vmatprep.subr.mxu0 0.0
  %1293 = vmatpush1.msra.mxu0 %v1069
  %1294 = vmatprep.mubr.f32.mxu0 %v655
  %1295 = vmatmul.mubr.f32.gmra.mrb[0].mxu0 %v654
  %v1296 = vpop.f32.mrb[0].mxu0
  %v1297 = vadd.f32 0.0, %v1296
  %v1298 = vpop.f32.mrb[0].mxu0
  %1299 = vmatprep.mubr.f32.mxu0 %v667
  %1300 = vmatmul.mubr.f32.gmra.mrb[0].mxu0 %v666
  %v1301 = vpop.f32.mrb[0].mxu0
  %v1302 = vadd.f32 0.0, %v1301
  %v1303 = vpop.f32.mrb[0].mxu0
  %1304 = vmatprep.mubr.f32.mxu0 %v679
  %1305 = vmatmul.mubr.f32.gmra.mrb[0].mxu0 %v678
  %v1306 = vpop.f32.mrb[0].mxu0
  %v1307 = vadd.f32 0.0, %v1306
  %v1308 = vpop.f32.mrb[0].mxu0
  %1309 = vmatprep.mubr.f32.mxu0 %v691
  %1310 = vmatmul.mubr.f32.gmra.mrb[0].mxu0 %v690
  %v1311 = vpop.f32.mrb[0].mxu0
  %v1312 = vadd.f32 0.0, %v1311
  %v1313 = vpop.f32.mrb[0].mxu0
  %1314 = vmatprep.mubr.f32.mxu0 %v703
  %1315 = vmatmul.mubr.f32.gmra.mrb[0].mxu0 %v702
  %v1316 = vpop.f32.mrb[0].mxu0
  %v1317 = vadd.f32 0.0, %v1316
  %v1318 = vpop.f32.mrb[0].mxu0
  %1319 = vmatprep.mubr.f32.mxu0 %v715
  %1320 = vmatmul.mubr.f32.gmra.mrb[0].mxu0 %v714
  %v1321 = vpop.f32.mrb[0].mxu0
  %v1322 = vadd.f32 0.0, %v1321
  %v1323 = vpop.f32.mrb[0].mxu0
  %1324 = vmatprep.mubr.f32.mxu0 %v727
  %1325 = vmatmul.mubr.f32.gmra.mrb[0].mxu0 %v726
  %v1326 = vpop.f32.mrb[0].mxu0
  %v1327 = vadd.f32 0.0, %v1326
  %v1328 = vpop.f32.mrb[0].mxu0
  %1329 = vmatprep.mubr.f32.mxu0 %v739
  %1330 = vmatmul.mubr.f32.gmra.mrb[0].mxu0 %v738
  %v1331 = vpop.f32.mrb[0].mxu0
  %v1332 = vadd.f32 0.0, %v1331
  %v1333 = vpop.f32.mrb[0].mxu0
  %1334 = vmatprep.mubr.f32.mxu0 %v751
  %1335 = vmatmul.mubr.f32.gmra.mrb[0].mxu0 %v750
  %v1336 = vpop.f32.mrb[0].mxu0
  %v1337 = vadd.f32 0.0, %v1336
  %v1338 = vpop.f32.mrb[0].mxu0
  %1339 = vmatprep.mubr.f32.mxu0 %v763
  %1340 = vmatmul.mubr.f32.gmra.mrb[0].mxu0 %v762
  %v1341 = vpop.f32.mrb[0].mxu0
  %v1342 = vadd.f32 0.0, %v1341
  %v1343 = vpop.f32.mrb[0].mxu0
  %1344 = vmatprep.mubr.f32.mxu0 %v775
  %1345 = vmatmul.mubr.f32.gmra.mrb[0].mxu0 %v774
  %v1346 = vpop.f32.mrb[0].mxu0
  %v1347 = vadd.f32 0.0, %v1346
  %v1348 = vpop.f32.mrb[0].mxu0
  %1349 = vmatprep.mubr.f32.mxu0 %v787
  %1350 = vmatmul.mubr.f32.gmra.mrb[0].mxu0 %v786
  %v1351 = vpop.f32.mrb[0].mxu0
  %v1352 = vadd.f32 0.0, %v1351
  %v1353 = vpop.f32.mrb[0].mxu0
  %1354 = vmatprep.mubr.f32.mxu0 %v799
  %1355 = vmatmul.mubr.f32.gmra.mrb[0].mxu0 %v798
  %v1356 = vpop.f32.mrb[0].mxu0
  %v1357 = vadd.f32 0.0, %v1356
  %v1358 = vpop.f32.mrb[0].mxu0
  %1359 = vmatprep.mubr.f32.mxu0 %v811
  %1360 = vmatmul.mubr.f32.gmra.mrb[0].mxu0 %v810
  %v1361 = vpop.f32.mrb[0].mxu0
  %v1362 = vadd.f32 0.0, %v1361
  %v1363 = vpop.f32.mrb[0].mxu0
  %1364 = vmatprep.mubr.f32.mxu0 %v823
  %1365 = vmatmul.mubr.f32.gmra.mrb[0].mxu0 %v822
  %v1366 = vpop.f32.mrb[0].mxu0
  %v1367 = vadd.f32 0.0, %v1366
  %v1368 = vpop.f32.mrb[0].mxu0
  %1369 = vmatprep.mubr.f32.mxu0 %v835
  %1370 = vmatmul.mubr.f32.gmra.mrb[0].mxu0 %v834
  %v1371 = vpop.f32.mrb[0].mxu0
  %v1372 = vadd.f32 0.0, %v1371
  %v1373 = vpop.f32.mrb[0].mxu0
  %1374 = vmatprep.mubr.f32.mxu0 %v847
  %1375 = vmatmul.mubr.f32.gmra.mrb[0].mxu0 %v846
  %v1376 = vpop.f32.mrb[0].mxu0
  %v1377 = vadd.f32 0.0, %v1376
  %v1378 = vpop.f32.mrb[0].mxu0
  %1379 = vmatprep.mubr.f32.mxu0 %v859
  %1380 = vmatmul.mubr.f32.gmra.mrb[0].mxu0 %v858
  %v1381 = vpop.f32.mrb[0].mxu0
  %v1382 = vadd.f32 0.0, %v1381
  %v1383 = vpop.f32.mrb[0].mxu0
  %1384 = vmatprep.mubr.f32.mxu0 %v871
  %1385 = vmatmul.mubr.f32.gmra.mrb[0].mxu0 %v870
  %v1386 = vpop.f32.mrb[0].mxu0
  %v1387 = vadd.f32 0.0, %v1386
  %v1388 = vpop.f32.mrb[0].mxu0
  %1389 = vmatprep.mubr.f32.mxu0 %v883
  %1390 = vmatmul.mubr.f32.gmra.mrb[0].mxu0 %v882
  %v1391 = vpop.f32.mrb[0].mxu0
  %v1392 = vadd.f32 0.0, %v1391
  %v1393 = vpop.f32.mrb[0].mxu0
  %1394 = vmatprep.mubr.f32.mxu0 %v895
  %1395 = vmatmul.mubr.f32.gmra.mrb[0].mxu0 %v894
  %v1396 = vpop.f32.mrb[0].mxu0
  %v1397 = vadd.f32 0.0, %v1396
  %v1398 = vpop.f32.mrb[0].mxu0
  %1399 = vmatprep.mubr.f32.mxu0 %v907
  %1400 = vmatmul.mubr.f32.gmra.mrb[0].mxu0 %v906
  %v1401 = vpop.f32.mrb[0].mxu0
  %v1402 = vadd.f32 0.0, %v1401
  %v1403 = vpop.f32.mrb[0].mxu0
  %1404 = vmatprep.mubr.f32.mxu0 %v919
  %1405 = vmatmul.mubr.f32.gmra.mrb[0].mxu0 %v918
  %v1406 = vpop.f32.mrb[0].mxu0
  %v1407 = vadd.f32 0.0, %v1406
  %v1408 = vpop.f32.mrb[0].mxu0
  %1409 = vmatprep.mubr.f32.mxu0 %v931
  %1410 = vmatmul.mubr.f32.gmra.mrb[0].mxu0 %v930
  %v1411 = vpop.f32.mrb[0].mxu0
  %v1412 = vadd.f32 0.0, %v1411
  %v1413 = vpop.f32.mrb[0].mxu0
  %1414 = vmatprep.mubr.f32.mxu0 %v943
  %1415 = vmatmul.mubr.f32.gmra.mrb[0].mxu0 %v942
  %v1416 = vpop.f32.mrb[0].mxu0
  %v1417 = vadd.f32 0.0, %v1416
  %v1418 = vpop.f32.mrb[0].mxu0
  %1419 = vmatprep.mubr.f32.mxu0 %v955
  %1420 = vmatmul.mubr.f32.gmra.mrb[0].mxu0 %v954
  %v1421 = vpop.f32.mrb[0].mxu0
  %v1422 = vadd.f32 0.0, %v1421
  %v1423 = vpop.f32.mrb[0].mxu0
  %1424 = vmatprep.mubr.f32.mxu0 %v967
  %1425 = vmatmul.mubr.f32.gmra.mrb[0].mxu0 %v966
  %v1426 = vpop.f32.mrb[0].mxu0
  %v1427 = vadd.f32 0.0, %v1426
  %v1428 = vpop.f32.mrb[0].mxu0
  %1429 = vmatprep.mubr.f32.mxu0 %v979
  %1430 = vmatmul.mubr.f32.gmra.mrb[0].mxu0 %v978
  %v1431 = vpop.f32.mrb[0].mxu0
  %v1432 = vadd.f32 0.0, %v1431
  %v1433 = vpop.f32.mrb[0].mxu0
  %1434 = vmatprep.mubr.f32.mxu0 %v991
  %1435 = vmatmul.mubr.f32.gmra.mrb[0].mxu0 %v990
  %v1436 = vpop.f32.mrb[0].mxu0
  %v1437 = vadd.f32 0.0, %v1436
  %v1438 = vpop.f32.mrb[0].mxu0
  %1439 = vmatprep.mubr.f32.mxu0 %v1003
  %1440 = vmatmul.mubr.f32.gmra.mrb[0].mxu0 %v1002
  %v1441 = vpop.f32.mrb[0].mxu0
  %v1442 = vadd.f32 0.0, %v1441
  %v1443 = vpop.f32.mrb[0].mxu0
  %1444 = vmatprep.mubr.f32.mxu0 %v1015
  %1445 = vmatmul.mubr.f32.gmra.mrb[0].mxu0 %v1014
  %v1446 = vpop.f32.mrb[0].mxu0
  %v1447 = vadd.f32 0.0, %v1446
  %v1448 = vpop.f32.mrb[0].mxu0
  %1449 = vmatprep.mubr.f32.mxu0 %v1027
  %1450 = vmatmul.mubr.f32.gmra.mrb[0].mxu0 %v1026
  %v1451 = vpop.f32.mrb[0].mxu0
  %v1452 = vadd.f32 0.0, %v1451
  %v1453 = vpop.f32.mrb[0].mxu0
  %1454 = vdwg.mxu0
  %1455 = vmatprep.subr.mxu0 0.0
  %1456 = vmatpush1.msra.mxu0 %v1070
  %1457 = vmatprep.subr.mxu0 0.0
  %1458 = vmatpush1.msra.mxu0 %v1071
  %1459 = vmatprep.subr.mxu0 0.0
  %1460 = vmatpush1.msra.mxu0 %v1072
  %1461 = vmatprep.subr.mxu0 0.0
  %1462 = vmatpush1.msra.mxu0 %v1073
  %1463 = vmatprep.subr.mxu0 0.0
  %1464 = vmatpush1.msra.mxu0 %v1074
  %1465 = vmatprep.subr.mxu0 0.0
  %1466 = vmatpush1.msra.mxu0 %v1075
  %1467 = vmatprep.subr.mxu0 0.0
  %1468 = vmatpush1.msra.mxu0 %v1076
  %1469 = vmatprep.subr.mxu0 0.0
  %1470 = vmatpush1.msra.mxu0 %v1077
  %1471 = vmatprep.subr.mxu0 0.0
  %1472 = vmatpush1.msra.mxu0 %v1078
  %1473 = vmatprep.subr.mxu0 0.0
  %1474 = vmatpush1.msra.mxu0 %v1079
  %1475 = vmatprep.subr.mxu0 0.0
  %1476 = vmatpush1.msra.mxu0 %v1080
  %1477 = vmatprep.subr.mxu0 0.0
  %1478 = vmatpush1.msra.mxu0 %v1081
  %1479 = vmatprep.subr.mxu0 0.0
  %1480 = vmatpush1.msra.mxu0 %v1082
  %1481 = vmatprep.subr.mxu0 0.0
  %1482 = vmatpush1.msra.mxu0 %v1083
  %1483 = vmatprep.subr.mxu0 0.0
  %1484 = vmatpush1.msra.mxu0 %v1084
  %1485 = vmatprep.subr.mxu0 0.0
  %1486 = vmatpush1.msra.mxu0 %v1085
  %1487 = vmatprep.subr.mxu0 0.0
  %1488 = vmatpush1.msra.mxu0 %v1086
  %1489 = vmatprep.subr.mxu0 0.0
  %1490 = vmatpush1.msra.mxu0 %v1087
  %1491 = vmatprep.subr.mxu0 0.0
  %1492 = vmatpush1.msra.mxu0 %v1088
  %1493 = vmatprep.subr.mxu0 0.0
  %1494 = vmatpush1.msra.mxu0 %v1089
  %1495 = vmatprep.subr.mxu0 0.0
  %1496 = vmatpush1.msra.mxu0 %v1090
  %1497 = vmatprep.subr.mxu0 0.0
  %1498 = vmatpush1.msra.mxu0 %v1091
  %1499 = vmatprep.subr.mxu0 0.0
  %1500 = vmatpush1.msra.mxu0 %v1092
  %1501 = vmatprep.subr.mxu0 0.0
  %1502 = vmatpush1.msra.mxu0 %v1093
  %1503 = vmatprep.subr.mxu0 0.0
  %1504 = vmatpush1.msra.mxu0 %v1094
  %1505 = vmatprep.subr.mxu0 0.0
  %1506 = vmatpush1.msra.mxu0 %v1095
  %1507 = vmatprep.subr.mxu0 0.0
  %1508 = vmatpush1.msra.mxu0 %v1096
  %1509 = vmatprep.subr.mxu0 0.0
  %1510 = vmatpush1.msra.mxu0 %v1097
  %1511 = vmatprep.subr.mxu0 0.0
  %1512 = vmatpush1.msra.mxu0 %v1098
  %1513 = vmatprep.subr.mxu0 0.0
  %1514 = vmatpush1.msra.mxu0 %v1099
  %1515 = vmatprep.subr.mxu0 0.0
  %1516 = vmatpush1.msra.mxu0 %v1100
  %1517 = vmatprep.subr.mxu0 0.0
  %1518 = vmatpush1.msra.mxu0 %v1101
  %1519 = vmatprep.mubr.f32.mxu0 %v657
  %1520 = vmatmul.mubr.f32.gmra.mrb[0].mxu0 %v656
  %v1521 = vpop.f32.mrb[0].mxu0
  %v1522 = vadd.f32 %v1297, %v1521
  %v1523 = vpop.f32.mrb[0].mxu0
  %1524 = vmatprep.mubr.f32.mxu0 %v669
  %1525 = vmatmul.mubr.f32.gmra.mrb[0].mxu0 %v668
  %v1526 = vpop.f32.mrb[0].mxu0
  %v1527 = vadd.f32 %v1302, %v1526
  %v1528 = vpop.f32.mrb[0].mxu0
  %1529 = vmatprep.mubr.f32.mxu0 %v681
  %1530 = vmatmul.mubr.f32.gmra.mrb[0].mxu0 %v680
  %v1531 = vpop.f32.mrb[0].mxu0
  %v1532 = vadd.f32 %v1307, %v1531
  %v1533 = vpop.f32.mrb[0].mxu0
  %1534 = vmatprep.mubr.f32.mxu0 %v693
  %1535 = vmatmul.mubr.f32.gmra.mrb[0].mxu0 %v692
  %v1536 = vpop.f32.mrb[0].mxu0
  %v1537 = vadd.f32 %v1312, %v1536
  %v1538 = vpop.f32.mrb[0].mxu0
  %1539 = vmatprep.mubr.f32.mxu0 %v705
  %1540 = vmatmul.mubr.f32.gmra.mrb[0].mxu0 %v704
  %v1541 = vpop.f32.mrb[0].mxu0
  %v1542 = vadd.f32 %v1317, %v1541
  %v1543 = vpop.f32.mrb[0].mxu0
  %1544 = vmatprep.mubr.f32.mxu0 %v717
  %1545 = vmatmul.mubr.f32.gmra.mrb[0].mxu0 %v716
  %v1546 = vpop.f32.mrb[0].mxu0
  %v1547 = vadd.f32 %v1322, %v1546
  %v1548 = vpop.f32.mrb[0].mxu0
  %1549 = vmatprep.mubr.f32.mxu0 %v729
  %1550 = vmatmul.mubr.f32.gmra.mrb[0].mxu0 %v728
  %v1551 = vpop.f32.mrb[0].mxu0
  %v1552 = vadd.f32 %v1327, %v1551
  %v1553 = vpop.f32.mrb[0].mxu0
  %1554 = vmatprep.mubr.f32.mxu0 %v741
  %1555 = vmatmul.mubr.f32.gmra.mrb[0].mxu0 %v740
  %v1556 = vpop.f32.mrb[0].mxu0
  %v1557 = vadd.f32 %v1332, %v1556
  %v1558 = vpop.f32.mrb[0].mxu0
  %1559 = vmatprep.mubr.f32.mxu0 %v753
  %1560 = vmatmul.mubr.f32.gmra.mrb[0].mxu0 %v752
  %v1561 = vpop.f32.mrb[0].mxu0
  %v1562 = vadd.f32 %v1337, %v1561
  %v1563 = vpop.f32.mrb[0].mxu0
  %1564 = vmatprep.mubr.f32.mxu0 %v765
  %1565 = vmatmul.mubr.f32.gmra.mrb[0].mxu0 %v764
  %v1566 = vpop.f32.mrb[0].mxu0
  %v1567 = vadd.f32 %v1342, %v1566
  %v1568 = vpop.f32.mrb[0].mxu0
  %1569 = vmatprep.mubr.f32.mxu0 %v777
  %1570 = vmatmul.mubr.f32.gmra.mrb[0].mxu0 %v776
  %v1571 = vpop.f32.mrb[0].mxu0
  %v1572 = vadd.f32 %v1347, %v1571
  %v1573 = vpop.f32.mrb[0].mxu0
  %1574 = vmatprep.mubr.f32.mxu0 %v789
  %1575 = vmatmul.mubr.f32.gmra.mrb[0].mxu0 %v788
  %v1576 = vpop.f32.mrb[0].mxu0
  %v1577 = vadd.f32 %v1352, %v1576
  %v1578 = vpop.f32.mrb[0].mxu0
  %1579 = vmatprep.mubr.f32.mxu0 %v801
  %1580 = vmatmul.mubr.f32.gmra.mrb[0].mxu0 %v800
  %v1581 = vpop.f32.mrb[0].mxu0
  %v1582 = vadd.f32 %v1357, %v1581
  %v1583 = vpop.f32.mrb[0].mxu0
  %1584 = vmatprep.mubr.f32.mxu0 %v813
  %1585 = vmatmul.mubr.f32.gmra.mrb[0].mxu0 %v812
  %v1586 = vpop.f32.mrb[0].mxu0
  %v1587 = vadd.f32 %v1362, %v1586
  %v1588 = vpop.f32.mrb[0].mxu0
  %1589 = vmatprep.mubr.f32.mxu0 %v825
  %1590 = vmatmul.mubr.f32.gmra.mrb[0].mxu0 %v824
  %v1591 = vpop.f32.mrb[0].mxu0
  %v1592 = vadd.f32 %v1367, %v1591
  %v1593 = vpop.f32.mrb[0].mxu0
  %1594 = vmatprep.mubr.f32.mxu0 %v837
  %1595 = vmatmul.mubr.f32.gmra.mrb[0].mxu0 %v836
  %v1596 = vpop.f32.mrb[0].mxu0
  %v1597 = vadd.f32 %v1372, %v1596
  %v1598 = vpop.f32.mrb[0].mxu0
  %1599 = vmatprep.mubr.f32.mxu0 %v849
  %1600 = vmatmul.mubr.f32.gmra.mrb[0].mxu0 %v848
  %v1601 = vpop.f32.mrb[0].mxu0
  %v1602 = vadd.f32 %v1377, %v1601
  %v1603 = vpop.f32.mrb[0].mxu0
  %1604 = vmatprep.mubr.f32.mxu0 %v861
  %1605 = vmatmul.mubr.f32.gmra.mrb[0].mxu0 %v860
  %v1606 = vpop.f32.mrb[0].mxu0
  %v1607 = vadd.f32 %v1382, %v1606
  %v1608 = vpop.f32.mrb[0].mxu0
  %1609 = vmatprep.mubr.f32.mxu0 %v873
  %1610 = vmatmul.mubr.f32.gmra.mrb[0].mxu0 %v872
  %v1611 = vpop.f32.mrb[0].mxu0
  %v1612 = vadd.f32 %v1387, %v1611
  %v1613 = vpop.f32.mrb[0].mxu0
  %1614 = vmatprep.mubr.f32.mxu0 %v885
  %1615 = vmatmul.mubr.f32.gmra.mrb[0].mxu0 %v884
  %v1616 = vpop.f32.mrb[0].mxu0
  %v1617 = vadd.f32 %v1392, %v1616
  %v1618 = vpop.f32.mrb[0].mxu0
  %1619 = vmatprep.mubr.f32.mxu0 %v897
  %1620 = vmatmul.mubr.f32.gmra.mrb[0].mxu0 %v896
  %v1621 = vpop.f32.mrb[0].mxu0
  %v1622 = vadd.f32 %v1397, %v1621
  %v1623 = vpop.f32.mrb[0].mxu0
  %1624 = vmatprep.mubr.f32.mxu0 %v909
  %1625 = vmatmul.mubr.f32.gmra.mrb[0].mxu0 %v908
  %v1626 = vpop.f32.mrb[0].mxu0
  %v1627 = vadd.f32 %v1402, %v1626
  %v1628 = vpop.f32.mrb[0].mxu0
  %1629 = vmatprep.mubr.f32.mxu0 %v921
  %1630 = vmatmul.mubr.f32.gmra.mrb[0].mxu0 %v920
  %v1631 = vpop.f32.mrb[0].mxu0
  %v1632 = vadd.f32 %v1407, %v1631
  %v1633 = vpop.f32.mrb[0].mxu0
  %1634 = vmatprep.mubr.f32.mxu0 %v933
  %1635 = vmatmul.mubr.f32.gmra.mrb[0].mxu0 %v932
  %v1636 = vpop.f32.mrb[0].mxu0
  %v1637 = vadd.f32 %v1412, %v1636
  %v1638 = vpop.f32.mrb[0].mxu0
  %1639 = vmatprep.mubr.f32.mxu0 %v945
  %1640 = vmatmul.mubr.f32.gmra.mrb[0].mxu0 %v944
  %v1641 = vpop.f32.mrb[0].mxu0
  %v1642 = vadd.f32 %v1417, %v1641
  %v1643 = vpop.f32.mrb[0].mxu0
  %1644 = vmatprep.mubr.f32.mxu0 %v957
  %1645 = vmatmul.mubr.f32.gmra.mrb[0].mxu0 %v956
  %v1646 = vpop.f32.mrb[0].mxu0
  %v1647 = vadd.f32 %v1422, %v1646
  %v1648 = vpop.f32.mrb[0].mxu0
  %1649 = vmatprep.mubr.f32.mxu0 %v969
  %1650 = vmatmul.mubr.f32.gmra.mrb[0].mxu0 %v968
  %v1651 = vpop.f32.mrb[0].mxu0
  %v1652 = vadd.f32 %v1427, %v1651
  %v1653 = vpop.f32.mrb[0].mxu0
  %1654 = vmatprep.mubr.f32.mxu0 %v981
  %1655 = vmatmul.mubr.f32.gmra.mrb[0].mxu0 %v980
  %v1656 = vpop.f32.mrb[0].mxu0
  %v1657 = vadd.f32 %v1432, %v1656
  %v1658 = vpop.f32.mrb[0].mxu0
  %1659 = vmatprep.mubr.f32.mxu0 %v993
  %1660 = vmatmul.mubr.f32.gmra.mrb[0].mxu0 %v992
  %v1661 = vpop.f32.mrb[0].mxu0
  %v1662 = vadd.f32 %v1437, %v1661
  %v1663 = vpop.f32.mrb[0].mxu0
  %1664 = vmatprep.mubr.f32.mxu0 %v1005
  %1665 = vmatmul.mubr.f32.gmra.mrb[0].mxu0 %v1004
  %v1666 = vpop.f32.mrb[0].mxu0
  %v1667 = vadd.f32 %v1442, %v1666
  %v1668 = vpop.f32.mrb[0].mxu0
  %1669 = vmatprep.mubr.f32.mxu0 %v1017
  %1670 = vmatmul.mubr.f32.gmra.mrb[0].mxu0 %v1016
  %v1671 = vpop.f32.mrb[0].mxu0
  %v1672 = vadd.f32 %v1447, %v1671
  %v1673 = vpop.f32.mrb[0].mxu0
  %1674 = vmatprep.mubr.f32.mxu0 %v1029
  %1675 = vmatmul.mubr.f32.gmra.mrb[0].mxu0 %v1028
  %v1676 = vpop.f32.mrb[0].mxu0
  %v1677 = vadd.f32 %v1452, %v1676
  %v1678 = vpop.f32.mrb[0].mxu0
  %1679 = vdwg.mxu0
  %1680 = vmatprep.subr.mxu0 0.0
  %1681 = vmatpush1.msra.mxu0 %v1102
  %1682 = vmatprep.subr.mxu0 0.0
  %1683 = vmatpush1.msra.mxu0 %v1103
  %1684 = vmatprep.subr.mxu0 0.0
  %1685 = vmatpush1.msra.mxu0 %v1104
  %1686 = vmatprep.subr.mxu0 0.0
  %1687 = vmatpush1.msra.mxu0 %v1105
  %1688 = vmatprep.subr.mxu0 0.0
  %1689 = vmatpush1.msra.mxu0 %v1106
  %1690 = vmatprep.subr.mxu0 0.0
  %1691 = vmatpush1.msra.mxu0 %v1107
  %1692 = vmatprep.subr.mxu0 0.0
  %1693 = vmatpush1.msra.mxu0 %v1108
  %1694 = vmatprep.subr.mxu0 0.0
  %1695 = vmatpush1.msra.mxu0 %v1109
  %1696 = vmatprep.subr.mxu0 0.0
  %1697 = vmatpush1.msra.mxu0 %v1110
  %1698 = vmatprep.subr.mxu0 0.0
  %1699 = vmatpush1.msra.mxu0 %v1111
  %1700 = vmatprep.subr.mxu0 0.0
  %1701 = vmatpush1.msra.mxu0 %v1112
  %1702 = vmatprep.subr.mxu0 0.0
  %1703 = vmatpush1.msra.mxu0 %v1113
  %1704 = vmatprep.subr.mxu0 0.0
  %1705 = vmatpush1.msra.mxu0 %v1114
  %1706 = vmatprep.subr.mxu0 0.0
  %1707 = vmatpush1.msra.mxu0 %v1115
  %1708 = vmatprep.subr.mxu0 0.0
  %1709 = vmatpush1.msra.mxu0 %v1116
  %1710 = vmatprep.subr.mxu0 0.0
  %1711 = vmatpush1.msra.mxu0 %v1117
  %1712 = vmatprep.subr.mxu0 0.0
  %1713 = vmatpush1.msra.mxu0 %v1118
  %1714 = vmatprep.subr.mxu0 0.0
  %1715 = vmatpush1.msra.mxu0 %v1119
  %1716 = vmatprep.subr.mxu0 0.0
  %1717 = vmatpush1.msra.mxu0 %v1120
  %1718 = vmatprep.subr.mxu0 0.0
  %1719 = vmatpush1.msra.mxu0 %v1121
  %1720 = vmatprep.subr.mxu0 0.0
  %1721 = vmatpush1.msra.mxu0 %v1122
  %1722 = vmatprep.subr.mxu0 0.0
  %1723 = vmatpush1.msra.mxu0 %v1123
  %1724 = vmatprep.subr.mxu0 0.0
  %1725 = vmatpush1.msra.mxu0 %v1124
  %1726 = vmatprep.subr.mxu0 0.0
  %1727 = vmatpush1.msra.mxu0 %v1125
  %1728 = vmatprep.subr.mxu0 0.0
  %1729 = vmatpush1.msra.mxu0 %v1126
  %1730 = vmatprep.subr.mxu0 0.0
  %1731 = vmatpush1.msra.mxu0 %v1127
  %1732 = vmatprep.subr.mxu0 0.0
  %1733 = vmatpush1.msra.mxu0 %v1128
  %1734 = vmatprep.subr.mxu0 0.0
  %1735 = vmatpush1.msra.mxu0 %v1129
  %1736 = vmatprep.subr.mxu0 0.0
  %1737 = vmatpush1.msra.mxu0 %v1130
  %1738 = vmatprep.subr.mxu0 0.0
  %1739 = vmatpush1.msra.mxu0 %v1131
  %1740 = vmatprep.subr.mxu0 0.0
  %1741 = vmatpush1.msra.mxu0 %v1132
  %1742 = vmatprep.subr.mxu0 0.0
  %1743 = vmatpush1.msra.mxu0 %v1133
  %1744 = vmatprep.mubr.f32.mxu0 %v659
  %1745 = vmatmul.mubr.f32.gmra.mrb[0].mxu0 %v658
  %v1746 = vpop.f32.mrb[0].mxu0
  %v1747 = vadd.f32 %v1522, %v1746
  %v1748 = vpop.f32.mrb[0].mxu0
  %1749 = vmatprep.mubr.f32.mxu0 %v671
  %1750 = vmatmul.mubr.f32.gmra.mrb[0].mxu0 %v670
  %v1751 = vpop.f32.mrb[0].mxu0
  %v1752 = vadd.f32 %v1527, %v1751
  %v1753 = vpop.f32.mrb[0].mxu0
  %1754 = vmatprep.mubr.f32.mxu0 %v683
  %1755 = vmatmul.mubr.f32.gmra.mrb[0].mxu0 %v682
  %v1756 = vpop.f32.mrb[0].mxu0
  %v1757 = vadd.f32 %v1532, %v1756
  %v1758 = vpop.f32.mrb[0].mxu0
  %1759 = vmatprep.mubr.f32.mxu0 %v695
  %1760 = vmatmul.mubr.f32.gmra.mrb[0].mxu0 %v694
  %v1761 = vpop.f32.mrb[0].mxu0
  %v1762 = vadd.f32 %v1537, %v1761
  %v1763 = vpop.f32.mrb[0].mxu0
  %1764 = vmatprep.mubr.f32.mxu0 %v707
  %1765 = vmatmul.mubr.f32.gmra.mrb[0].mxu0 %v706
  %v1766 = vpop.f32.mrb[0].mxu0
  %v1767 = vadd.f32 %v1542, %v1766
  %v1768 = vpop.f32.mrb[0].mxu0
  %1769 = vmatprep.mubr.f32.mxu0 %v719
  %1770 = vmatmul.mubr.f32.gmra.mrb[0].mxu0 %v718
  %v1771 = vpop.f32.mrb[0].mxu0
  %v1772 = vadd.f32 %v1547, %v1771
  %v1773 = vpop.f32.mrb[0].mxu0
  %1774 = vmatprep.mubr.f32.mxu0 %v731
  %1775 = vmatmul.mubr.f32.gmra.mrb[0].mxu0 %v730
  %v1776 = vpop.f32.mrb[0].mxu0
  %v1777 = vadd.f32 %v1552, %v1776
  %v1778 = vpop.f32.mrb[0].mxu0
  %1779 = vmatprep.mubr.f32.mxu0 %v743
  %1780 = vmatmul.mubr.f32.gmra.mrb[0].mxu0 %v742
  %v1781 = vpop.f32.mrb[0].mxu0
  %v1782 = vadd.f32 %v1557, %v1781
  %v1783 = vpop.f32.mrb[0].mxu0
  %1784 = vmatprep.mubr.f32.mxu0 %v755
  %1785 = vmatmul.mubr.f32.gmra.mrb[0].mxu0 %v754
  %v1786 = vpop.f32.mrb[0].mxu0
  %v1787 = vadd.f32 %v1562, %v1786
  %v1788 = vpop.f32.mrb[0].mxu0
  %1789 = vmatprep.mubr.f32.mxu0 %v767
  %1790 = vmatmul.mubr.f32.gmra.mrb[0].mxu0 %v766
  %v1791 = vpop.f32.mrb[0].mxu0
  %v1792 = vadd.f32 %v1567, %v1791
  %v1793 = vpop.f32.mrb[0].mxu0
  %1794 = vmatprep.mubr.f32.mxu0 %v779
  %1795 = vmatmul.mubr.f32.gmra.mrb[0].mxu0 %v778
  %v1796 = vpop.f32.mrb[0].mxu0
  %v1797 = vadd.f32 %v1572, %v1796
  %v1798 = vpop.f32.mrb[0].mxu0
  %1799 = vmatprep.mubr.f32.mxu0 %v791
  %1800 = vmatmul.mubr.f32.gmra.mrb[0].mxu0 %v790
  %v1801 = vpop.f32.mrb[0].mxu0
  %v1802 = vadd.f32 %v1577, %v1801
  %v1803 = vpop.f32.mrb[0].mxu0
  %1804 = vmatprep.mubr.f32.mxu0 %v803
  %1805 = vmatmul.mubr.f32.gmra.mrb[0].mxu0 %v802
  %v1806 = vpop.f32.mrb[0].mxu0
  %v1807 = vadd.f32 %v1582, %v1806
  %v1808 = vpop.f32.mrb[0].mxu0
  %1809 = vmatprep.mubr.f32.mxu0 %v815
  %1810 = vmatmul.mubr.f32.gmra.mrb[0].mxu0 %v814
  %v1811 = vpop.f32.mrb[0].mxu0
  %v1812 = vadd.f32 %v1587, %v1811
  %v1813 = vpop.f32.mrb[0].mxu0
  %1814 = vmatprep.mubr.f32.mxu0 %v827
  %1815 = vmatmul.mubr.f32.gmra.mrb[0].mxu0 %v826
  %v1816 = vpop.f32.mrb[0].mxu0
  %v1817 = vadd.f32 %v1592, %v1816
  %v1818 = vpop.f32.mrb[0].mxu0
  %1819 = vmatprep.mubr.f32.mxu0 %v839
  %1820 = vmatmul.mubr.f32.gmra.mrb[0].mxu0 %v838
  %v1821 = vpop.f32.mrb[0].mxu0
  %v1822 = vadd.f32 %v1597, %v1821
  %v1823 = vpop.f32.mrb[0].mxu0
  %1824 = vmatprep.mubr.f32.mxu0 %v851
  %1825 = vmatmul.mubr.f32.gmra.mrb[0].mxu0 %v850
  %v1826 = vpop.f32.mrb[0].mxu0
  %v1827 = vadd.f32 %v1602, %v1826
  %v1828 = vpop.f32.mrb[0].mxu0
  %1829 = vmatprep.mubr.f32.mxu0 %v863
  %1830 = vmatmul.mubr.f32.gmra.mrb[0].mxu0 %v862
  %v1831 = vpop.f32.mrb[0].mxu0
  %v1832 = vadd.f32 %v1607, %v1831
  %v1833 = vpop.f32.mrb[0].mxu0
  %1834 = vmatprep.mubr.f32.mxu0 %v875
  %1835 = vmatmul.mubr.f32.gmra.mrb[0].mxu0 %v874
  %v1836 = vpop.f32.mrb[0].mxu0
  %v1837 = vadd.f32 %v1612, %v1836
  %v1838 = vpop.f32.mrb[0].mxu0
  %1839 = vmatprep.mubr.f32.mxu0 %v887
  %1840 = vmatmul.mubr.f32.gmra.mrb[0].mxu0 %v886
  %v1841 = vpop.f32.mrb[0].mxu0
  %v1842 = vadd.f32 %v1617, %v1841
  %v1843 = vpop.f32.mrb[0].mxu0
  %1844 = vmatprep.mubr.f32.mxu0 %v899
  %1845 = vmatmul.mubr.f32.gmra.mrb[0].mxu0 %v898
  %v1846 = vpop.f32.mrb[0].mxu0
  %v1847 = vadd.f32 %v1622, %v1846
  %v1848 = vpop.f32.mrb[0].mxu0
  %1849 = vmatprep.mubr.f32.mxu0 %v911
  %1850 = vmatmul.mubr.f32.gmra.mrb[0].mxu0 %v910
  %v1851 = vpop.f32.mrb[0].mxu0
  %v1852 = vadd.f32 %v1627, %v1851
  %v1853 = vpop.f32.mrb[0].mxu0
  %1854 = vmatprep.mubr.f32.mxu0 %v923
  %1855 = vmatmul.mubr.f32.gmra.mrb[0].mxu0 %v922
  %v1856 = vpop.f32.mrb[0].mxu0
  %v1857 = vadd.f32 %v1632, %v1856
  %v1858 = vpop.f32.mrb[0].mxu0
  %1859 = vmatprep.mubr.f32.mxu0 %v935
  %1860 = vmatmul.mubr.f32.gmra.mrb[0].mxu0 %v934
  %v1861 = vpop.f32.mrb[0].mxu0
  %v1862 = vadd.f32 %v1637, %v1861
  %v1863 = vpop.f32.mrb[0].mxu0
  %1864 = vmatprep.mubr.f32.mxu0 %v947
  %1865 = vmatmul.mubr.f32.gmra.mrb[0].mxu0 %v946
  %v1866 = vpop.f32.mrb[0].mxu0
  %v1867 = vadd.f32 %v1642, %v1866
  %v1868 = vpop.f32.mrb[0].mxu0
  %1869 = vmatprep.mubr.f32.mxu0 %v959
  %1870 = vmatmul.mubr.f32.gmra.mrb[0].mxu0 %v958
  %v1871 = vpop.f32.mrb[0].mxu0
  %v1872 = vadd.f32 %v1647, %v1871
  %v1873 = vpop.f32.mrb[0].mxu0
  %1874 = vmatprep.mubr.f32.mxu0 %v971
  %1875 = vmatmul.mubr.f32.gmra.mrb[0].mxu0 %v970
  %v1876 = vpop.f32.mrb[0].mxu0
  %v1877 = vadd.f32 %v1652, %v1876
  %v1878 = vpop.f32.mrb[0].mxu0
  %1879 = vmatprep.mubr.f32.mxu0 %v983
  %1880 = vmatmul.mubr.f32.gmra.mrb[0].mxu0 %v982
  %v1881 = vpop.f32.mrb[0].mxu0
  %v1882 = vadd.f32 %v1657, %v1881
  %v1883 = vpop.f32.mrb[0].mxu0
  %1884 = vmatprep.mubr.f32.mxu0 %v995
  %1885 = vmatmul.mubr.f32.gmra.mrb[0].mxu0 %v994
  %v1886 = vpop.f32.mrb[0].mxu0
  %v1887 = vadd.f32 %v1662, %v1886
  %v1888 = vpop.f32.mrb[0].mxu0
  %1889 = vmatprep.mubr.f32.mxu0 %v1007
  %1890 = vmatmul.mubr.f32.gmra.mrb[0].mxu0 %v1006
  %v1891 = vpop.f32.mrb[0].mxu0
  %v1892 = vadd.f32 %v1667, %v1891
  %v1893 = vpop.f32.mrb[0].mxu0
  %1894 = vmatprep.mubr.f32.mxu0 %v1019
  %1895 = vmatmul.mubr.f32.gmra.mrb[0].mxu0 %v1018
  %v1896 = vpop.f32.mrb[0].mxu0
  %v1897 = vadd.f32 %v1672, %v1896
  %v1898 = vpop.f32.mrb[0].mxu0
  %1899 = vmatprep.mubr.f32.mxu0 %v1031
  %1900 = vmatmul.mubr.f32.gmra.mrb[0].mxu0 %v1030
  %v1901 = vpop.f32.mrb[0].mxu0
  %v1902 = vadd.f32 %v1677, %v1901
  %v1903 = vpop.f32.mrb[0].mxu0
  %1904 = vdwg.mxu0
  %1905 = vmatprep.subr.mxu0 0.0
  %1906 = vmatpush1.msra.mxu0 %v1134
  %1907 = vmatprep.subr.mxu0 0.0
  %1908 = vmatpush1.msra.mxu0 %v1135
  %1909 = vmatprep.subr.mxu0 0.0
  %1910 = vmatpush1.msra.mxu0 %v1136
  %1911 = vmatprep.subr.mxu0 0.0
  %1912 = vmatpush1.msra.mxu0 %v1137
  %1913 = vmatprep.subr.mxu0 0.0
  %1914 = vmatpush1.msra.mxu0 %v1138
  %1915 = vmatprep.subr.mxu0 0.0
  %1916 = vmatpush1.msra.mxu0 %v1139
  %1917 = vmatprep.subr.mxu0 0.0
  %1918 = vmatpush1.msra.mxu0 %v1140
  %1919 = vmatprep.subr.mxu0 0.0
  %1920 = vmatpush1.msra.mxu0 %v1141
  %1921 = vmatprep.subr.mxu0 0.0
  %1922 = vmatpush1.msra.mxu0 %v1142
  %1923 = vmatprep.subr.mxu0 0.0
  %1924 = vmatpush1.msra.mxu0 %v1143
  %1925 = vmatprep.subr.mxu0 0.0
  %1926 = vmatpush1.msra.mxu0 %v1144
  %1927 = vmatprep.subr.mxu0 0.0
  %1928 = vmatpush1.msra.mxu0 %v1145
  %1929 = vmatprep.subr.mxu0 0.0
  %1930 = vmatpush1.msra.mxu0 %v1146
  %1931 = vmatprep.subr.mxu0 0.0
  %1932 = vmatpush1.msra.mxu0 %v1147
  %1933 = vmatprep.subr.mxu0 0.0
  %1934 = vmatpush1.msra.mxu0 %v1148
  %1935 = vmatprep.subr.mxu0 0.0
  %1936 = vmatpush1.msra.mxu0 %v1149
  %1937 = vmatprep.subr.mxu0 0.0
  %1938 = vmatpush1.msra.mxu0 %v1150
  %1939 = vmatprep.subr.mxu0 0.0
  %1940 = vmatpush1.msra.mxu0 %v1151
  %1941 = vmatprep.subr.mxu0 0.0
  %1942 = vmatpush1.msra.mxu0 %v1152
  %1943 = vmatprep.subr.mxu0 0.0
  %1944 = vmatpush1.msra.mxu0 %v1153
  %1945 = vmatprep.subr.mxu0 0.0
  %1946 = vmatpush1.msra.mxu0 %v1154
  %1947 = vmatprep.subr.mxu0 0.0
  %1948 = vmatpush1.msra.mxu0 %v1155
  %1949 = vmatprep.subr.mxu0 0.0
  %1950 = vmatpush1.msra.mxu0 %v1156
  %1951 = vmatprep.subr.mxu0 0.0
  %1952 = vmatpush1.msra.mxu0 %v1157
  %1953 = vmatprep.subr.mxu0 0.0
  %1954 = vmatpush1.msra.mxu0 %v1158
  %1955 = vmatprep.subr.mxu0 0.0
  %1956 = vmatpush1.msra.mxu0 %v1159
  %1957 = vmatprep.subr.mxu0 0.0
  %1958 = vmatpush1.msra.mxu0 %v1160
  %1959 = vmatprep.subr.mxu0 0.0
  %1960 = vmatpush1.msra.mxu0 %v1161
  %1961 = vmatprep.subr.mxu0 0.0
  %1962 = vmatpush1.msra.mxu0 %v1162
  %1963 = vmatprep.subr.mxu0 0.0
  %1964 = vmatpush1.msra.mxu0 %v1163
  %1965 = vmatprep.subr.mxu0 0.0
  %1966 = vmatpush1.msra.mxu0 %v1164
  %1967 = vmatprep.subr.mxu0 0.0
  %1968 = vmatpush1.msra.mxu0 %v1165
  %1969 = vmatprep.mubr.f32.mxu0 %v661
  %1970 = vmatmul.mubr.f32.gmra.mrb[0].mxu0 %v660
  %v1971 = vpop.f32.mrb[0].mxu0
  %v1972 = vadd.f32 %v1747, %v1971
  %v1973 = vpop.f32.mrb[0].mxu0
  %1974 = vmatprep.mubr.f32.mxu0 %v673
  %1975 = vmatmul.mubr.f32.gmra.mrb[0].mxu0 %v672
  %v1976 = vpop.f32.mrb[0].mxu0
  %v1977 = vadd.f32 %v1752, %v1976
  %v1978 = vpop.f32.mrb[0].mxu0
  %1979 = vmatprep.mubr.f32.mxu0 %v685
  %1980 = vmatmul.mubr.f32.gmra.mrb[0].mxu0 %v684
  %v1981 = vpop.f32.mrb[0].mxu0
  %v1982 = vadd.f32 %v1757, %v1981
  %v1983 = vpop.f32.mrb[0].mxu0
  %1984 = vmatprep.mubr.f32.mxu0 %v697
  %1985 = vmatmul.mubr.f32.gmra.mrb[0].mxu0 %v696
  %v1986 = vpop.f32.mrb[0].mxu0
  %v1987 = vadd.f32 %v1762, %v1986
  %v1988 = vpop.f32.mrb[0].mxu0
  %1989 = vmatprep.mubr.f32.mxu0 %v709
  %1990 = vmatmul.mubr.f32.gmra.mrb[0].mxu0 %v708
  %v1991 = vpop.f32.mrb[0].mxu0
  %v1992 = vadd.f32 %v1767, %v1991
  %v1993 = vpop.f32.mrb[0].mxu0
  %1994 = vmatprep.mubr.f32.mxu0 %v721
  %1995 = vmatmul.mubr.f32.gmra.mrb[0].mxu0 %v720
  %v1996 = vpop.f32.mrb[0].mxu0
  %v1997 = vadd.f32 %v1772, %v1996
  %v1998 = vpop.f32.mrb[0].mxu0
  %1999 = vmatprep.mubr.f32.mxu0 %v733
  %2000 = vmatmul.mubr.f32.gmra.mrb[0].mxu0 %v732
  %v2001 = vpop.f32.mrb[0].mxu0
  %v2002 = vadd.f32 %v1777, %v2001
  %v2003 = vpop.f32.mrb[0].mxu0
  %2004 = vmatprep.mubr.f32.mxu0 %v745
  %2005 = vmatmul.mubr.f32.gmra.mrb[0].mxu0 %v744
  %v2006 = vpop.f32.mrb[0].mxu0
  %v2007 = vadd.f32 %v1782, %v2006
  %v2008 = vpop.f32.mrb[0].mxu0
  %2009 = vmatprep.mubr.f32.mxu0 %v757
  %2010 = vmatmul.mubr.f32.gmra.mrb[0].mxu0 %v756
  %v2011 = vpop.f32.mrb[0].mxu0
  %v2012 = vadd.f32 %v1787, %v2011
  %v2013 = vpop.f32.mrb[0].mxu0
  %2014 = vmatprep.mubr.f32.mxu0 %v769
  %2015 = vmatmul.mubr.f32.gmra.mrb[0].mxu0 %v768
  %v2016 = vpop.f32.mrb[0].mxu0
  %v2017 = vadd.f32 %v1792, %v2016
  %v2018 = vpop.f32.mrb[0].mxu0
  %2019 = vmatprep.mubr.f32.mxu0 %v781
  %2020 = vmatmul.mubr.f32.gmra.mrb[0].mxu0 %v780
  %v2021 = vpop.f32.mrb[0].mxu0
  %v2022 = vadd.f32 %v1797, %v2021
  %v2023 = vpop.f32.mrb[0].mxu0
  %2024 = vmatprep.mubr.f32.mxu0 %v793
  %2025 = vmatmul.mubr.f32.gmra.mrb[0].mxu0 %v792
  %v2026 = vpop.f32.mrb[0].mxu0
  %v2027 = vadd.f32 %v1802, %v2026
  %v2028 = vpop.f32.mrb[0].mxu0
  %2029 = vmatprep.mubr.f32.mxu0 %v805
  %2030 = vmatmul.mubr.f32.gmra.mrb[0].mxu0 %v804
  %v2031 = vpop.f32.mrb[0].mxu0
  %v2032 = vadd.f32 %v1807, %v2031
  %v2033 = vpop.f32.mrb[0].mxu0
  %2034 = vmatprep.mubr.f32.mxu0 %v817
  %2035 = vmatmul.mubr.f32.gmra.mrb[0].mxu0 %v816
  %v2036 = vpop.f32.mrb[0].mxu0
  %v2037 = vadd.f32 %v1812, %v2036
  %v2038 = vpop.f32.mrb[0].mxu0
  %2039 = vmatprep.mubr.f32.mxu0 %v829
  %2040 = vmatmul.mubr.f32.gmra.mrb[0].mxu0 %v828
  %v2041 = vpop.f32.mrb[0].mxu0
  %v2042 = vadd.f32 %v1817, %v2041
  %v2043 = vpop.f32.mrb[0].mxu0
  %2044 = vmatprep.mubr.f32.mxu0 %v841
  %2045 = vmatmul.mubr.f32.gmra.mrb[0].mxu0 %v840
  %v2046 = vpop.f32.mrb[0].mxu0
  %v2047 = vadd.f32 %v1822, %v2046
  %v2048 = vpop.f32.mrb[0].mxu0
  %2049 = vmatprep.mubr.f32.mxu0 %v853
  %2050 = vmatmul.mubr.f32.gmra.mrb[0].mxu0 %v852
  %v2051 = vpop.f32.mrb[0].mxu0
  %v2052 = vadd.f32 %v1827, %v2051
  %v2053 = vpop.f32.mrb[0].mxu0
  %2054 = vmatprep.mubr.f32.mxu0 %v865
  %2055 = vmatmul.mubr.f32.gmra.mrb[0].mxu0 %v864
  %v2056 = vpop.f32.mrb[0].mxu0
  %v2057 = vadd.f32 %v1832, %v2056
  %v2058 = vpop.f32.mrb[0].mxu0
  %2059 = vmatprep.mubr.f32.mxu0 %v877
  %2060 = vmatmul.mubr.f32.gmra.mrb[0].mxu0 %v876
  %v2061 = vpop.f32.mrb[0].mxu0
  %v2062 = vadd.f32 %v1837, %v2061
  %v2063 = vpop.f32.mrb[0].mxu0
  %2064 = vmatprep.mubr.f32.mxu0 %v889
  %2065 = vmatmul.mubr.f32.gmra.mrb[0].mxu0 %v888
  %v2066 = vpop.f32.mrb[0].mxu0
  %v2067 = vadd.f32 %v1842, %v2066
  %v2068 = vpop.f32.mrb[0].mxu0
  %2069 = vmatprep.mubr.f32.mxu0 %v901
  %2070 = vmatmul.mubr.f32.gmra.mrb[0].mxu0 %v900
  %v2071 = vpop.f32.mrb[0].mxu0
  %v2072 = vadd.f32 %v1847, %v2071
  %v2073 = vpop.f32.mrb[0].mxu0
  %2074 = vmatprep.mubr.f32.mxu0 %v913
  %2075 = vmatmul.mubr.f32.gmra.mrb[0].mxu0 %v912
  %v2076 = vpop.f32.mrb[0].mxu0
  %v2077 = vadd.f32 %v1852, %v2076
  %v2078 = vpop.f32.mrb[0].mxu0
  %2079 = vmatprep.mubr.f32.mxu0 %v925
  %2080 = vmatmul.mubr.f32.gmra.mrb[0].mxu0 %v924
  %v2081 = vpop.f32.mrb[0].mxu0
  %v2082 = vadd.f32 %v1857, %v2081
  %v2083 = vpop.f32.mrb[0].mxu0
  %2084 = vmatprep.mubr.f32.mxu0 %v937
  %2085 = vmatmul.mubr.f32.gmra.mrb[0].mxu0 %v936
  %v2086 = vpop.f32.mrb[0].mxu0
  %v2087 = vadd.f32 %v1862, %v2086
  %v2088 = vpop.f32.mrb[0].mxu0
  %2089 = vmatprep.mubr.f32.mxu0 %v949
  %2090 = vmatmul.mubr.f32.gmra.mrb[0].mxu0 %v948
  %v2091 = vpop.f32.mrb[0].mxu0
  %v2092 = vadd.f32 %v1867, %v2091
  %v2093 = vpop.f32.mrb[0].mxu0
  %2094 = vmatprep.mubr.f32.mxu0 %v961
  %2095 = vmatmul.mubr.f32.gmra.mrb[0].mxu0 %v960
  %v2096 = vpop.f32.mrb[0].mxu0
  %v2097 = vadd.f32 %v1872, %v2096
  %v2098 = vpop.f32.mrb[0].mxu0
  %2099 = vmatprep.mubr.f32.mxu0 %v973
  %2100 = vmatmul.mubr.f32.gmra.mrb[0].mxu0 %v972
  %v2101 = vpop.f32.mrb[0].mxu0
  %v2102 = vadd.f32 %v1877, %v2101
  %v2103 = vpop.f32.mrb[0].mxu0
  %2104 = vmatprep.mubr.f32.mxu0 %v985
  %2105 = vmatmul.mubr.f32.gmra.mrb[0].mxu0 %v984
  %v2106 = vpop.f32.mrb[0].mxu0
  %v2107 = vadd.f32 %v1882, %v2106
  %v2108 = vpop.f32.mrb[0].mxu0
  %2109 = vmatprep.mubr.f32.mxu0 %v997
  %2110 = vmatmul.mubr.f32.gmra.mrb[0].mxu0 %v996
  %v2111 = vpop.f32.mrb[0].mxu0
  %v2112 = vadd.f32 %v1887, %v2111
  %v2113 = vpop.f32.mrb[0].mxu0
  %2114 = vmatprep.mubr.f32.mxu0 %v1009
  %2115 = vmatmul.mubr.f32.gmra.mrb[0].mxu0 %v1008
  %v2116 = vpop.f32.mrb[0].mxu0
  %v2117 = vadd.f32 %v1892, %v2116
  %v2118 = vpop.f32.mrb[0].mxu0
  %2119 = vmatprep.mubr.f32.mxu0 %v1021
  %2120 = vmatmul.mubr.f32.gmra.mrb[0].mxu0 %v1020
  %v2121 = vpop.f32.mrb[0].mxu0
  %v2122 = vadd.f32 %v1897, %v2121
  %v2123 = vpop.f32.mrb[0].mxu0
  %2124 = vmatprep.mubr.f32.mxu0 %v1033
  %2125 = vmatmul.mubr.f32.gmra.mrb[0].mxu0 %v1032
  %v2126 = vpop.f32.mrb[0].mxu0
  %v2127 = vadd.f32 %v1902, %v2126
  %v2128 = vpop.f32.mrb[0].mxu0
  %2129 = vdwg.mxu0
  %2130 = vmatprep.subr.mxu0 0.0
  %2131 = vmatpush1.msra.mxu0 %v1166
  %2132 = vmatprep.subr.mxu0 0.0
  %2133 = vmatpush1.msra.mxu0 %v1167
  %2134 = vmatprep.subr.mxu0 0.0
  %2135 = vmatpush1.msra.mxu0 %v1168
  %2136 = vmatprep.subr.mxu0 0.0
  %2137 = vmatpush1.msra.mxu0 %v1169
  %2138 = vmatprep.subr.mxu0 0.0
  %2139 = vmatpush1.msra.mxu0 %v1170
  %2140 = vmatprep.subr.mxu0 0.0
  %2141 = vmatpush1.msra.mxu0 %v1171
  %2142 = vmatprep.subr.mxu0 0.0
  %2143 = vmatpush1.msra.mxu0 %v1172
  %2144 = vmatprep.subr.mxu0 0.0
  %2145 = vmatpush1.msra.mxu0 %v1173
  %2146 = vmatprep.subr.mxu0 0.0
  %2147 = vmatpush1.msra.mxu0 %v1174
  %2148 = vmatprep.subr.mxu0 0.0
  %2149 = vmatpush1.msra.mxu0 %v1175
  %2150 = vmatprep.subr.mxu0 0.0
  %2151 = vmatpush1.msra.mxu0 %v1176
  %2152 = vmatprep.subr.mxu0 0.0
  %2153 = vmatpush1.msra.mxu0 %v1177
  %2154 = vmatprep.subr.mxu0 0.0
  %2155 = vmatpush1.msra.mxu0 %v1178
  %2156 = vmatprep.subr.mxu0 0.0
  %2157 = vmatpush1.msra.mxu0 %v1179
  %2158 = vmatprep.subr.mxu0 0.0
  %2159 = vmatpush1.msra.mxu0 %v1180
  %2160 = vmatprep.subr.mxu0 0.0
  %2161 = vmatpush1.msra.mxu0 %v1181
  %2162 = vmatprep.subr.mxu0 0.0
  %2163 = vmatpush1.msra.mxu0 %v1182
  %2164 = vmatprep.subr.mxu0 0.0
  %2165 = vmatpush1.msra.mxu0 %v1183
  %2166 = vmatprep.subr.mxu0 0.0
  %2167 = vmatpush1.msra.mxu0 %v1184
  %2168 = vmatprep.subr.mxu0 0.0
  %2169 = vmatpush1.msra.mxu0 %v1185
  %2170 = vmatprep.subr.mxu0 0.0
  %2171 = vmatpush1.msra.mxu0 %v1186
  %2172 = vmatprep.subr.mxu0 0.0
  %2173 = vmatpush1.msra.mxu0 %v1187
  %2174 = vmatprep.subr.mxu0 0.0
  %2175 = vmatpush1.msra.mxu0 %v1188
  %2176 = vmatprep.subr.mxu0 0.0
  %2177 = vmatpush1.msra.mxu0 %v1189
  %2178 = vmatprep.subr.mxu0 0.0
  %2179 = vmatpush1.msra.mxu0 %v1190
  %2180 = vmatprep.subr.mxu0 0.0
  %2181 = vmatpush1.msra.mxu0 %v1191
  %2182 = vmatprep.subr.mxu0 0.0
  %2183 = vmatpush1.msra.mxu0 %v1192
  %2184 = vmatprep.subr.mxu0 0.0
  %2185 = vmatpush1.msra.mxu0 %v1193
  %2186 = vmatprep.subr.mxu0 0.0
  %2187 = vmatpush1.msra.mxu0 %v1194
  %2188 = vmatprep.subr.mxu0 0.0
  %2189 = vmatpush1.msra.mxu0 %v1195
  %2190 = vmatprep.subr.mxu0 0.0
  %2191 = vmatpush1.msra.mxu0 %v1196
  %2192 = vmatprep.subr.mxu0 0.0
  %2193 = vmatpush1.msra.mxu0 %v1197
  %2194 = vmatprep.mubr.f32.mxu0 %v663
  %2195 = vmatmul.mubr.f32.gmra.mrb[0].mxu0 %v662
  %v2196 = vpop.f32.mrb[0].mxu0
  %v2197 = vadd.f32 %v1972, %v2196
  %v2198 = vpop.f32.mrb[0].mxu0
  %2199 = vmatprep.mubr.f32.mxu0 %v675
  %2200 = vmatmul.mubr.f32.gmra.mrb[0].mxu0 %v674
  %v2201 = vpop.f32.mrb[0].mxu0
  %v2202 = vadd.f32 %v1977, %v2201
  %v2203 = vpop.f32.mrb[0].mxu0
  %2204 = vmatprep.mubr.f32.mxu0 %v687
  %2205 = vmatmul.mubr.f32.gmra.mrb[0].mxu0 %v686
  %v2206 = vpop.f32.mrb[0].mxu0
  %v2207 = vadd.f32 %v1982, %v2206
  %v2208 = vpop.f32.mrb[0].mxu0
  %2209 = vmatprep.mubr.f32.mxu0 %v699
  %2210 = vmatmul.mubr.f32.gmra.mrb[0].mxu0 %v698
  %v2211 = vpop.f32.mrb[0].mxu0
  %v2212 = vadd.f32 %v1987, %v2211
  %v2213 = vpop.f32.mrb[0].mxu0
  %2214 = vmatprep.mubr.f32.mxu0 %v711
  %2215 = vmatmul.mubr.f32.gmra.mrb[0].mxu0 %v710
  %v2216 = vpop.f32.mrb[0].mxu0
  %v2217 = vadd.f32 %v1992, %v2216
  %v2218 = vpop.f32.mrb[0].mxu0
  %2219 = vmatprep.mubr.f32.mxu0 %v723
  %2220 = vmatmul.mubr.f32.gmra.mrb[0].mxu0 %v722
  %v2221 = vpop.f32.mrb[0].mxu0
  %v2222 = vadd.f32 %v1997, %v2221
  %v2223 = vpop.f32.mrb[0].mxu0
  %2224 = vmatprep.mubr.f32.mxu0 %v735
  %2225 = vmatmul.mubr.f32.gmra.mrb[0].mxu0 %v734
  %v2226 = vpop.f32.mrb[0].mxu0
  %v2227 = vadd.f32 %v2002, %v2226
  %v2228 = vpop.f32.mrb[0].mxu0
  %2229 = vmatprep.mubr.f32.mxu0 %v747
  %2230 = vmatmul.mubr.f32.gmra.mrb[0].mxu0 %v746
  %v2231 = vpop.f32.mrb[0].mxu0
  %v2232 = vadd.f32 %v2007, %v2231
  %v2233 = vpop.f32.mrb[0].mxu0
  %2234 = vmatprep.mubr.f32.mxu0 %v759
  %2235 = vmatmul.mubr.f32.gmra.mrb[0].mxu0 %v758
  %v2236 = vpop.f32.mrb[0].mxu0
  %v2237 = vadd.f32 %v2012, %v2236
  %v2238 = vpop.f32.mrb[0].mxu0
  %2239 = vmatprep.mubr.f32.mxu0 %v771
  %2240 = vmatmul.mubr.f32.gmra.mrb[0].mxu0 %v770
  %v2241 = vpop.f32.mrb[0].mxu0
  %v2242 = vadd.f32 %v2017, %v2241
  %v2243 = vpop.f32.mrb[0].mxu0
  %2244 = vmatprep.mubr.f32.mxu0 %v783
  %2245 = vmatmul.mubr.f32.gmra.mrb[0].mxu0 %v782
  %v2246 = vpop.f32.mrb[0].mxu0
  %v2247 = vadd.f32 %v2022, %v2246
  %v2248 = vpop.f32.mrb[0].mxu0
  %2249 = vmatprep.mubr.f32.mxu0 %v795
  %2250 = vmatmul.mubr.f32.gmra.mrb[0].mxu0 %v794
  %v2251 = vpop.f32.mrb[0].mxu0
  %v2252 = vadd.f32 %v2027, %v2251
  %v2253 = vpop.f32.mrb[0].mxu0
  %2254 = vmatprep.mubr.f32.mxu0 %v807
  %2255 = vmatmul.mubr.f32.gmra.mrb[0].mxu0 %v806
  %v2256 = vpop.f32.mrb[0].mxu0
  %v2257 = vadd.f32 %v2032, %v2256
  %v2258 = vpop.f32.mrb[0].mxu0
  %2259 = vmatprep.mubr.f32.mxu0 %v819
  %2260 = vmatmul.mubr.f32.gmra.mrb[0].mxu0 %v818
  %v2261 = vpop.f32.mrb[0].mxu0
  %v2262 = vadd.f32 %v2037, %v2261
  %v2263 = vpop.f32.mrb[0].mxu0
  %2264 = vmatprep.mubr.f32.mxu0 %v831
  %2265 = vmatmul.mubr.f32.gmra.mrb[0].mxu0 %v830
  %v2266 = vpop.f32.mrb[0].mxu0
  %v2267 = vadd.f32 %v2042, %v2266
  %v2268 = vpop.f32.mrb[0].mxu0
  %2269 = vmatprep.mubr.f32.mxu0 %v843
  %2270 = vmatmul.mubr.f32.gmra.mrb[0].mxu0 %v842
  %v2271 = vpop.f32.mrb[0].mxu0
  %v2272 = vadd.f32 %v2047, %v2271
  %v2273 = vpop.f32.mrb[0].mxu0
  %2274 = vmatprep.mubr.f32.mxu0 %v855
  %2275 = vmatmul.mubr.f32.gmra.mrb[0].mxu0 %v854
  %v2276 = vpop.f32.mrb[0].mxu0
  %v2277 = vadd.f32 %v2052, %v2276
  %v2278 = vpop.f32.mrb[0].mxu0
  %2279 = vmatprep.mubr.f32.mxu0 %v867
  %2280 = vmatmul.mubr.f32.gmra.mrb[0].mxu0 %v866
  %v2281 = vpop.f32.mrb[0].mxu0
  %v2282 = vadd.f32 %v2057, %v2281
  %v2283 = vpop.f32.mrb[0].mxu0
  %2284 = vmatprep.mubr.f32.mxu0 %v879
  %2285 = vmatmul.mubr.f32.gmra.mrb[0].mxu0 %v878
  %v2286 = vpop.f32.mrb[0].mxu0
  %v2287 = vadd.f32 %v2062, %v2286
  %v2288 = vpop.f32.mrb[0].mxu0
  %2289 = vmatprep.mubr.f32.mxu0 %v891
  %2290 = vmatmul.mubr.f32.gmra.mrb[0].mxu0 %v890
  %v2291 = vpop.f32.mrb[0].mxu0
  %v2292 = vadd.f32 %v2067, %v2291
  %v2293 = vpop.f32.mrb[0].mxu0
  %2294 = vmatprep.mubr.f32.mxu0 %v903
  %2295 = vmatmul.mubr.f32.gmra.mrb[0].mxu0 %v902
  %v2296 = vpop.f32.mrb[0].mxu0
  %v2297 = vadd.f32 %v2072, %v2296
  %v2298 = vpop.f32.mrb[0].mxu0
  %2299 = vmatprep.mubr.f32.mxu0 %v915
  %2300 = vmatmul.mubr.f32.gmra.mrb[0].mxu0 %v914
  %v2301 = vpop.f32.mrb[0].mxu0
  %v2302 = vadd.f32 %v2077, %v2301
  %v2303 = vpop.f32.mrb[0].mxu0
  %2304 = vmatprep.mubr.f32.mxu0 %v927
  %2305 = vmatmul.mubr.f32.gmra.mrb[0].mxu0 %v926
  %v2306 = vpop.f32.mrb[0].mxu0
  %v2307 = vadd.f32 %v2082, %v2306
  %v2308 = vpop.f32.mrb[0].mxu0
  %2309 = vmatprep.mubr.f32.mxu0 %v939
  %2310 = vmatmul.mubr.f32.gmra.mrb[0].mxu0 %v938
  %v2311 = vpop.f32.mrb[0].mxu0
  %v2312 = vadd.f32 %v2087, %v2311
  %v2313 = vpop.f32.mrb[0].mxu0
  %2314 = vmatprep.mubr.f32.mxu0 %v951
  %2315 = vmatmul.mubr.f32.gmra.mrb[0].mxu0 %v950
  %v2316 = vpop.f32.mrb[0].mxu0
  %v2317 = vadd.f32 %v2092, %v2316
  %v2318 = vpop.f32.mrb[0].mxu0
  %2319 = vmatprep.mubr.f32.mxu0 %v963
  %2320 = vmatmul.mubr.f32.gmra.mrb[0].mxu0 %v962
  %v2321 = vpop.f32.mrb[0].mxu0
  %v2322 = vadd.f32 %v2097, %v2321
  %v2323 = vpop.f32.mrb[0].mxu0
  %2324 = vmatprep.mubr.f32.mxu0 %v975
  %2325 = vmatmul.mubr.f32.gmra.mrb[0].mxu0 %v974
  %v2326 = vpop.f32.mrb[0].mxu0
  %v2327 = vadd.f32 %v2102, %v2326
  %v2328 = vpop.f32.mrb[0].mxu0
  %2329 = vmatprep.mubr.f32.mxu0 %v987
  %2330 = vmatmul.mubr.f32.gmra.mrb[0].mxu0 %v986
  %v2331 = vpop.f32.mrb[0].mxu0
  %v2332 = vadd.f32 %v2107, %v2331
  %v2333 = vpop.f32.mrb[0].mxu0
  %2334 = vmatprep.mubr.f32.mxu0 %v999
  %2335 = vmatmul.mubr.f32.gmra.mrb[0].mxu0 %v998
  %v2336 = vpop.f32.mrb[0].mxu0
  %v2337 = vadd.f32 %v2112, %v2336
  %v2338 = vpop.f32.mrb[0].mxu0
  %2339 = vmatprep.mubr.f32.mxu0 %v1011
  %2340 = vmatmul.mubr.f32.gmra.mrb[0].mxu0 %v1010
  %v2341 = vpop.f32.mrb[0].mxu0
  %v2342 = vadd.f32 %v2117, %v2341
  %v2343 = vpop.f32.mrb[0].mxu0
  %2344 = vmatprep.mubr.f32.mxu0 %v1023
  %2345 = vmatmul.mubr.f32.gmra.mrb[0].mxu0 %v1022
  %v2346 = vpop.f32.mrb[0].mxu0
  %v2347 = vadd.f32 %v2122, %v2346
  %v2348 = vpop.f32.mrb[0].mxu0
  %2349 = vmatprep.mubr.f32.mxu0 %v1035
  %2350 = vmatmul.mubr.f32.gmra.mrb[0].mxu0 %v1034
  %v2351 = vpop.f32.mrb[0].mxu0
  %v2352 = vadd.f32 %v2127, %v2351
  %v2353 = vpop.f32.mrb[0].mxu0
  %2354 = vdwg.mxu0
  %2355 = vmatprep.subr.mxu0 0.0
  %2356 = vmatpush1.msra.mxu0 %v1198
  %2357 = vmatprep.subr.mxu0 0.0
  %2358 = vmatpush1.msra.mxu0 %v1199
  %2359 = vmatprep.subr.mxu0 0.0
  %2360 = vmatpush1.msra.mxu0 %v1200
  %2361 = vmatprep.subr.mxu0 0.0
  %2362 = vmatpush1.msra.mxu0 %v1201
  %2363 = vmatprep.subr.mxu0 0.0
  %2364 = vmatpush1.msra.mxu0 %v1202
  %2365 = vmatprep.subr.mxu0 0.0
  %2366 = vmatpush1.msra.mxu0 %v1203
  %2367 = vmatprep.subr.mxu0 0.0
  %2368 = vmatpush1.msra.mxu0 %v1204
  %2369 = vmatprep.subr.mxu0 0.0
  %2370 = vmatpush1.msra.mxu0 %v1205
  %2371 = vmatprep.subr.mxu0 0.0
  %2372 = vmatpush1.msra.mxu0 %v1206
  %2373 = vmatprep.subr.mxu0 0.0
  %2374 = vmatpush1.msra.mxu0 %v1207
  %2375 = vmatprep.subr.mxu0 0.0
  %2376 = vmatpush1.msra.mxu0 %v1208
  %2377 = vmatprep.subr.mxu0 0.0
  %2378 = vmatpush1.msra.mxu0 %v1209
  %2379 = vmatprep.subr.mxu0 0.0
  %2380 = vmatpush1.msra.mxu0 %v1210
  %2381 = vmatprep.subr.mxu0 0.0
  %2382 = vmatpush1.msra.mxu0 %v1211
  %2383 = vmatprep.subr.mxu0 0.0
  %2384 = vmatpush1.msra.mxu0 %v1212
  %2385 = vmatprep.subr.mxu0 0.0
  %2386 = vmatpush1.msra.mxu0 %v1213
  %2387 = vmatprep.subr.mxu0 0.0
  %2388 = vmatpush1.msra.mxu0 %v1214
  %2389 = vmatprep.subr.mxu0 0.0
  %2390 = vmatpush1.msra.mxu0 %v1215
  %2391 = vmatprep.subr.mxu0 0.0
  %2392 = vmatpush1.msra.mxu0 %v1216
  %2393 = vmatprep.subr.mxu0 0.0
  %2394 = vmatpush1.msra.mxu0 %v1217
  %2395 = vmatprep.subr.mxu0 0.0
  %2396 = vmatpush1.msra.mxu0 %v1218
  %2397 = vmatprep.subr.mxu0 0.0
  %2398 = vmatpush1.msra.mxu0 %v1219
  %2399 = vmatprep.subr.mxu0 0.0
  %2400 = vmatpush1.msra.mxu0 %v1220
  %2401 = vmatprep.subr.mxu0 0.0
  %2402 = vmatpush1.msra.mxu0 %v1221
  %2403 = vmatprep.subr.mxu0 0.0
  %2404 = vmatpush1.msra.mxu0 %v1222
  %2405 = vmatprep.subr.mxu0 0.0
  %2406 = vmatpush1.msra.mxu0 %v1223
  %2407 = vmatprep.subr.mxu0 0.0
  %2408 = vmatpush1.msra.mxu0 %v1224
  %2409 = vmatprep.subr.mxu0 0.0
  %2410 = vmatpush1.msra.mxu0 %v1225
  %2411 = vmatprep.subr.mxu0 0.0
  %2412 = vmatpush1.msra.mxu0 %v1226
  %2413 = vmatprep.subr.mxu0 0.0
  %2414 = vmatpush1.msra.mxu0 %v1227
  %2415 = vmatprep.subr.mxu0 0.0
  %2416 = vmatpush1.msra.mxu0 %v1228
  %2417 = vmatprep.subr.mxu0 0.0
  %2418 = vmatpush1.msra.mxu0 %v1229
  %2419 = vmatprep.mubr.f32.mxu0 %v665
  %2420 = vmatmul.mubr.f32.gmra.mrb[0].mxu0 %v664
  %v2421 = vpop.f32.mrb[0].mxu0
  %v2422 = vadd.f32 %v2197, %v2421
  %v2423 = vpop.f32.mrb[0].mxu0
  %2424 = vmatprep.mubr.f32.mxu0 %v677
  %2425 = vmatmul.mubr.f32.gmra.mrb[0].mxu0 %v676
  %v2426 = vpop.f32.mrb[0].mxu0
  %v2427 = vadd.f32 %v2202, %v2426
  %v2428 = vpop.f32.mrb[0].mxu0
  %2429 = vmatprep.mubr.f32.mxu0 %v689
  %2430 = vmatmul.mubr.f32.gmra.mrb[0].mxu0 %v688
  %v2431 = vpop.f32.mrb[0].mxu0
  %v2432 = vadd.f32 %v2207, %v2431
  %v2433 = vpop.f32.mrb[0].mxu0
  %2434 = vmatprep.mubr.f32.mxu0 %v701
  %2435 = vmatmul.mubr.f32.gmra.mrb[0].mxu0 %v700
  %v2436 = vpop.f32.mrb[0].mxu0
  %v2437 = vadd.f32 %v2212, %v2436
  %v2438 = vpop.f32.mrb[0].mxu0
  %2439 = vmatprep.mubr.f32.mxu0 %v713
  %2440 = vmatmul.mubr.f32.gmra.mrb[0].mxu0 %v712
  %v2441 = vpop.f32.mrb[0].mxu0
  %v2442 = vadd.f32 %v2217, %v2441
  %v2443 = vpop.f32.mrb[0].mxu0
  %2444 = vmatprep.mubr.f32.mxu0 %v725
  %2445 = vmatmul.mubr.f32.gmra.mrb[0].mxu0 %v724
  %v2446 = vpop.f32.mrb[0].mxu0
  %v2447 = vadd.f32 %v2222, %v2446
  %v2448 = vpop.f32.mrb[0].mxu0
  %2449 = vmatprep.mubr.f32.mxu0 %v737
  %2450 = vmatmul.mubr.f32.gmra.mrb[0].mxu0 %v736
  %v2451 = vpop.f32.mrb[0].mxu0
  %v2452 = vadd.f32 %v2227, %v2451
  %v2453 = vpop.f32.mrb[0].mxu0
  %2454 = vmatprep.mubr.f32.mxu0 %v749
  %2455 = vmatmul.mubr.f32.gmra.mrb[0].mxu0 %v748
  %v2456 = vpop.f32.mrb[0].mxu0
  %v2457 = vadd.f32 %v2232, %v2456
  %v2458 = vpop.f32.mrb[0].mxu0
  %2459 = vmatprep.mubr.f32.mxu0 %v761
  %2460 = vmatmul.mubr.f32.gmra.mrb[0].mxu0 %v760
  %v2461 = vpop.f32.mrb[0].mxu0
  %v2462 = vadd.f32 %v2237, %v2461
  %v2463 = vpop.f32.mrb[0].mxu0
  %2464 = vmatprep.mubr.f32.mxu0 %v773
  %2465 = vmatmul.mubr.f32.gmra.mrb[0].mxu0 %v772
  %v2466 = vpop.f32.mrb[0].mxu0
  %v2467 = vadd.f32 %v2242, %v2466
  %v2468 = vpop.f32.mrb[0].mxu0
  %2469 = vmatprep.mubr.f32.mxu0 %v785
  %2470 = vmatmul.mubr.f32.gmra.mrb[0].mxu0 %v784
  %v2471 = vpop.f32.mrb[0].mxu0
  %v2472 = vadd.f32 %v2247, %v2471
  %v2473 = vpop.f32.mrb[0].mxu0
  %2474 = vmatprep.mubr.f32.mxu0 %v797
  %2475 = vmatmul.mubr.f32.gmra.mrb[0].mxu0 %v796
  %v2476 = vpop.f32.mrb[0].mxu0
  %v2477 = vadd.f32 %v2252, %v2476
  %v2478 = vpop.f32.mrb[0].mxu0
  %2479 = vmatprep.mubr.f32.mxu0 %v809
  %2480 = vmatmul.mubr.f32.gmra.mrb[0].mxu0 %v808
  %v2481 = vpop.f32.mrb[0].mxu0
  %v2482 = vadd.f32 %v2257, %v2481
  %v2483 = vpop.f32.mrb[0].mxu0
  %2484 = vmatprep.mubr.f32.mxu0 %v821
  %2485 = vmatmul.mubr.f32.gmra.mrb[0].mxu0 %v820
  %v2486 = vpop.f32.mrb[0].mxu0
  %v2487 = vadd.f32 %v2262, %v2486
  %v2488 = vpop.f32.mrb[0].mxu0
  %2489 = vmatprep.mubr.f32.mxu0 %v833
  %2490 = vmatmul.mubr.f32.gmra.mrb[0].mxu0 %v832
  %v2491 = vpop.f32.mrb[0].mxu0
  %v2492 = vadd.f32 %v2267, %v2491
  %v2493 = vpop.f32.mrb[0].mxu0
  %2494 = vmatprep.mubr.f32.mxu0 %v845
  %2495 = vmatmul.mubr.f32.gmra.mrb[0].mxu0 %v844
  %v2496 = vpop.f32.mrb[0].mxu0
  %v2497 = vadd.f32 %v2272, %v2496
  %v2498 = vpop.f32.mrb[0].mxu0
  %2499 = vmatprep.mubr.f32.mxu0 %v857
  %2500 = vmatmul.mubr.f32.gmra.mrb[0].mxu0 %v856
  %v2501 = vpop.f32.mrb[0].mxu0
  %v2502 = vadd.f32 %v2277, %v2501
  %v2503 = vpop.f32.mrb[0].mxu0
  %2504 = vmatprep.mubr.f32.mxu0 %v869
  %2505 = vmatmul.mubr.f32.gmra.mrb[0].mxu0 %v868
  %v2506 = vpop.f32.mrb[0].mxu0
  %v2507 = vadd.f32 %v2282, %v2506
  %v2508 = vpop.f32.mrb[0].mxu0
  %2509 = vmatprep.mubr.f32.mxu0 %v881
  %2510 = vmatmul.mubr.f32.gmra.mrb[0].mxu0 %v880
  %v2511 = vpop.f32.mrb[0].mxu0
  %v2512 = vadd.f32 %v2287, %v2511
  %v2513 = vpop.f32.mrb[0].mxu0
  %2514 = vmatprep.mubr.f32.mxu0 %v893
  %2515 = vmatmul.mubr.f32.gmra.mrb[0].mxu0 %v892
  %v2516 = vpop.f32.mrb[0].mxu0
  %v2517 = vadd.f32 %v2292, %v2516
  %v2518 = vpop.f32.mrb[0].mxu0
  %2519 = vmatprep.mubr.f32.mxu0 %v905
  %2520 = vmatmul.mubr.f32.gmra.mrb[0].mxu0 %v904
  %v2521 = vpop.f32.mrb[0].mxu0
  %v2522 = vadd.f32 %v2297, %v2521
  %v2523 = vpop.f32.mrb[0].mxu0
  %2524 = vmatprep.mubr.f32.mxu0 %v917
  %2525 = vmatmul.mubr.f32.gmra.mrb[0].mxu0 %v916
  %v2526 = vpop.f32.mrb[0].mxu0
  %v2527 = vadd.f32 %v2302, %v2526
  %v2528 = vpop.f32.mrb[0].mxu0
  %2529 = vmatprep.mubr.f32.mxu0 %v929
  %2530 = vmatmul.mubr.f32.gmra.mrb[0].mxu0 %v928
  %v2531 = vpop.f32.mrb[0].mxu0
  %v2532 = vadd.f32 %v2307, %v2531
  %v2533 = vpop.f32.mrb[0].mxu0
  %2534 = vmatprep.mubr.f32.mxu0 %v941
  %2535 = vmatmul.mubr.f32.gmra.mrb[0].mxu0 %v940
  %v2536 = vpop.f32.mrb[0].mxu0
  %v2537 = vadd.f32 %v2312, %v2536
  %v2538 = vpop.f32.mrb[0].mxu0
  %2539 = vmatprep.mubr.f32.mxu0 %v953
  %2540 = vmatmul.mubr.f32.gmra.mrb[0].mxu0 %v952
  %v2541 = vpop.f32.mrb[0].mxu0
  %v2542 = vadd.f32 %v2317, %v2541
  %v2543 = vpop.f32.mrb[0].mxu0
  %2544 = vmatprep.mubr.f32.mxu0 %v965
  %2545 = vmatmul.mubr.f32.gmra.mrb[0].mxu0 %v964
  %v2546 = vpop.f32.mrb[0].mxu0
  %v2547 = vadd.f32 %v2322, %v2546
  %v2548 = vpop.f32.mrb[0].mxu0
  %2549 = vmatprep.mubr.f32.mxu0 %v977
  %2550 = vmatmul.mubr.f32.gmra.mrb[0].mxu0 %v976
  %v2551 = vpop.f32.mrb[0].mxu0
  %v2552 = vadd.f32 %v2327, %v2551
  %v2553 = vpop.f32.mrb[0].mxu0
  %2554 = vmatprep.mubr.f32.mxu0 %v989
  %2555 = vmatmul.mubr.f32.gmra.mrb[0].mxu0 %v988
  %v2556 = vpop.f32.mrb[0].mxu0
  %v2557 = vadd.f32 %v2332, %v2556
  %v2558 = vpop.f32.mrb[0].mxu0
  %2559 = vmatprep.mubr.f32.mxu0 %v1001
  %2560 = vmatmul.mubr.f32.gmra.mrb[0].mxu0 %v1000
  %v2561 = vpop.f32.mrb[0].mxu0
  %v2562 = vadd.f32 %v2337, %v2561
  %v2563 = vpop.f32.mrb[0].mxu0
  %2564 = vmatprep.mubr.f32.mxu0 %v1013
  %2565 = vmatmul.mubr.f32.gmra.mrb[0].mxu0 %v1012
  %v2566 = vpop.f32.mrb[0].mxu0
  %v2567 = vadd.f32 %v2342, %v2566
  %v2568 = vpop.f32.mrb[0].mxu0
  %2569 = vmatprep.mubr.f32.mxu0 %v1025
  %2570 = vmatmul.mubr.f32.gmra.mrb[0].mxu0 %v1024
  %v2571 = vpop.f32.mrb[0].mxu0
  %v2572 = vadd.f32 %v2347, %v2571
  %v2573 = vpop.f32.mrb[0].mxu0
  %2574 = vmatprep.mubr.f32.mxu0 %v1037
  %2575 = vmatmul.mubr.f32.gmra.mrb[0].mxu0 %v1036
  %v2576 = vpop.f32.mrb[0].mxu0
  %v2577 = vadd.f32 %v2352, %v2576
  %v2578 = vpop.f32.mrb[0].mxu0
  %2579 = vdwg.mxu0
  %vm2580 = vcmask 400384
  %2581 = vst.msk [vmem:[%s3] sm:$0xff] %vm2580, %v2422
  %2582 = vst.msk [vmem:[%s3 + $0x8] sm:$0xff] %vm2580, %v2427
  %2583 = vst.msk [vmem:[%s3 + $0x10] sm:$0xff] %vm2580, %v2432
  %2584 = vst.msk [vmem:[%s3 + $0x18] sm:$0xff] %vm2580, %v2437
  %2585 = vst.msk [vmem:[%s3 + $0x20] sm:$0xff] %vm2580, %v2442
  %2586 = vst.msk [vmem:[%s3 + $0x28] sm:$0xff] %vm2580, %v2447
  %2587 = vst.msk [vmem:[%s3 + $0x30] sm:$0xff] %vm2580, %v2452
  %2588 = vst.msk [vmem:[%s3 + $0x38] sm:$0xff] %vm2580, %v2457
  %2589 = vst.msk [vmem:[%s3 + $0x40] sm:$0xff] %vm2580, %v2462
  %2590 = vst.msk [vmem:[%s3 + $0x48] sm:$0xff] %vm2580, %v2467
  %2591 = vst.msk [vmem:[%s3 + $0x50] sm:$0xff] %vm2580, %v2472
  %2592 = vst.msk [vmem:[%s3 + $0x58] sm:$0xff] %vm2580, %v2477
  %2593 = vst.msk [vmem:[%s3 + $0x60] sm:$0xff] %vm2580, %v2482
  %2594 = vst.msk [vmem:[%s3 + $0x68] sm:$0xff] %vm2580, %v2487
  %2595 = vst.msk [vmem:[%s3 + $0x70] sm:$0xff] %vm2580, %v2492
  %2596 = vst.msk [vmem:[%s3 + $0x78] sm:$0xff] %vm2580, %v2497
  %2597 = vst.msk [vmem:[%s3 + $0x80] sm:$0xff] %vm2580, %v2502
  %2598 = vst.msk [vmem:[%s3 + $0x88] sm:$0xff] %vm2580, %v2507
  %2599 = vst.msk [vmem:[%s3 + $0x90] sm:$0xff] %vm2580, %v2512
  %2600 = vst.msk [vmem:[%s3 + $0x98] sm:$0xff] %vm2580, %v2517
  %2601 = vst.msk [vmem:[%s3 + $0xa0] sm:$0xff] %vm2580, %v2522
  %2602 = vst.msk [vmem:[%s3 + $0xa8] sm:$0xff] %vm2580, %v2527
  %2603 = vst.msk [vmem:[%s3 + $0xb0] sm:$0xff] %vm2580, %v2532
  %2604 = vst.msk [vmem:[%s3 + $0xb8] sm:$0xff] %vm2580, %v2537
  %2605 = vst.msk [vmem:[%s3 + $0xc0] sm:$0xff] %vm2580, %v2542
  %2606 = vst.msk [vmem:[%s3 + $0xc8] sm:$0xff] %vm2580, %v2547
  %2607 = vst.msk [vmem:[%s3 + $0xd0] sm:$0xff] %vm2580, %v2552
  %2608 = vst.msk [vmem:[%s3 + $0xd8] sm:$0xff] %vm2580, %v2557
  %2609 = vst.msk [vmem:[%s3 + $0xe0] sm:$0xff] %vm2580, %v2562
  %2610 = vst.msk [vmem:[%s3 + $0xe8] sm:$0xff] %vm2580, %v2567
  %2611 = vst.msk [vmem:[%s3 + $0xf0] sm:$0xff] %vm2580, %v2572
  %2612 = vst.msk [vmem:[%s3 + $0xf8] sm:$0xff] %vm2580, %v2577
  // Predicated region
  $region14: #{tpu_custom_call.1} parent=0 // pred_check
    _
  $region15: #{tpu_custom_call.1} parent=0 // pred_check_branch
    %2614 = sbr.rel (0) target = $region17
  $region16: #{tpu_custom_call.1} parent=0 // pred_region
    _
  $region17: #{tpu_custom_call.1} parent=0 // pred_fallthru
    _
  // Predicated region
  $region18: #{tpu_custom_call.1} parent=0 // pred_check
    _
  $region19: #{tpu_custom_call.1} parent=0 // pred_check_branch
    %2616 = sbr.rel (0) target = $region21
  $region20: #{tpu_custom_call.1} parent=0 // pred_region
    _
  $region21: #{tpu_custom_call.1} parent=0 // pred_fallthru
    _

</llo_original>
